<compile_context>
chip_gen: v5e
topology: v5e:2x2
jax: 0.10.0
libtpu: 0.0.40
codegen_flags: <defaults>
</compile_context>

<pallas_src>
import functools

import jax
import jax.numpy as jnp
from jax.experimental import pallas as pl
from jax.experimental.pallas import tpu as pltpu


def _round_up(x, m):
    return ((x + m - 1) // m) * m


def _resident_spec(block_shape, index_map):
    """BlockSpec for grid-invariant inputs: single-buffered (halves VMEM)."""
    try:
        return pl.BlockSpec(block_shape, index_map, pipeline_mode=pl.Buffered(1))
    except (TypeError, AttributeError):
        # Older jax without pipeline_mode: fall back to default double-buffering.
        return pl.BlockSpec(block_shape, index_map)


# ---------------------------------------------------------------------------
# Pallas kernel: one grid step == t_blk GRU time steps for one batch block.
# ---------------------------------------------------------------------------
def _gru_recurrence_kernel(gi_ref, h0_ref, whh_ref, bhhn_ref, enc_ref, h_scratch):
    # gi_ref : (t_blk, b_blk, 3*Hp)  precomputed input-to-hidden activations
    #                                (gate-major columns r|z|n, biases folded,
    #                                 n-gate hidden bias NOT folded)
    # h0_ref : (b_blk, Hp)           initial hidden state for this batch block
    # whh_ref: (Hp, 3*Hp)            fused, gate-major hidden-to-hidden weights
    # bhhn_ref: (1, Hp)              n-gate hidden bias
    # enc_ref: (t_blk, b_blk, Hp)    per-step GRU outputs (time-major)
    # h_scratch: (b_blk, Hp)         hidden-state carry across T grid steps

    # Reset the carried hidden state at the start of each batch block
    # (program_id(1) is the sequential T axis).
    @pl.when(pl.program_id(1) == 0)
    def _():
        h_scratch[...] = h0_ref[...]

    t_blk = enc_ref.shape[0]
    hp = enc_ref.shape[-1]

    # Loop-invariant loads (hoisted out of the unrolled recurrence).
    whh = whh_ref[...]          # (Hp, 3*Hp)
    bhh_n = bhhn_ref[...]       # (1, Hp)

    def step(t, h):
        gi_t = gi_ref[t]                                            # (b_blk, 3*Hp)
        # Single fused MXU push per timestep; lane-aligned gate slices.
        gh = jnp.dot(h, whh, preferred_element_type=jnp.float32)    # (b_blk, 3*Hp)
        r = jax.nn.sigmoid(gi_t[:, :hp] + gh[:, :hp])
        z = jax.nn.sigmoid(gi_t[:, hp:2 * hp] + gh[:, hp:2 * hp])
        n = jnp.tanh(gi_t[:, 2 * hp:] + r * (gh[:, 2 * hp:] + bhh_n))
        h_new = n + z * (h - n)                                     # == (1-z)*n + z*h
        enc_ref[t] = h_new
        return h_new

    # Cap unroll to limit vreg pressure when t_blk is large.
    unroll = min(8, t_blk)
    h_final = jax.lax.fori_loop(0, t_blk, step, h_scratch[...], unroll=unroll)
    h_scratch[...] = h_final
    # NOTE: when T is padded, the tail steps keep updating h_scratch with
    # zero gi; the wrapper takes the "last hidden" from encodings[:, T-1],
    # never from this carried value.


# ---------------------------------------------------------------------------
# Parameter prep: gate-major, H-padded layouts with biases folded.
# ---------------------------------------------------------------------------
def _prep_gru_params(params, H, Hp):
    w_ih = params["w_ih"]          # (E, 3H), columns ordered [r|z|n]
    w_hh = params["w_hh"]          # (H, 3H)
    b_ih = params["b_ih"]          # (1, 3H)
    b_hh = params["b_hh"]          # (1, 3H)
    E = w_ih.shape[0]

    w_ih_gm = jnp.zeros((E, 3 * Hp), jnp.float32)
    w_hh_gm = jnp.zeros((Hp, 3 * Hp), jnp.float32)
    b_gi = jnp.zeros((1, 3 * Hp), jnp.float32)
    for g in range(3):
        w_ih_gm = w_ih_gm.at[:, g * Hp:g * Hp + H].set(w_ih[:, g * H:(g + 1) * H])
        w_hh_gm = w_hh_gm.at[:H, g * Hp:g * Hp + H].set(w_hh[:, g * H:(g + 1) * H])
    # Fold b_ih (all gates) and b_hh (r, z gates only) into gi.
    b_gi = b_gi.at[:, 0:H].set(b_ih[:, 0:H] + b_hh[:, 0:H])
    b_gi = b_gi.at[:, Hp:Hp + H].set(b_ih[:, H:2 * H] + b_hh[:, H:2 * H])
    b_gi = b_gi.at[:, 2 * Hp:2 * Hp + H].set(b_ih[:, 2 * H:3 * H])
    # n-gate hidden bias stays inside r * (h @ W_hn + b_hn).
    b_hh_n = jnp.zeros((1, Hp), jnp.float32).at[:, :H].set(b_hh[:, 2 * H:3 * H])
    return w_ih_gm, w_hh_gm, b_gi, b_hh_n


# ---------------------------------------------------------------------------
# Wrapper: hoisted input path (XLA) + recurrent Pallas kernel.
# ---------------------------------------------------------------------------
@functools.partial(jax.jit, static_argnames=("t_blk", "b_blk"))
def rnn_encoder_forward(params, obs_seq, act_seq, rew_seq, history=None,
                        t_blk=32, b_blk=8):
    """Mirrors RNNEncoder.forward for rnn_type='gru', num_layers=1.

    obs_seq: (B, T, obs_dim), act_seq: (B, T, act_dim), rew_seq: (B, T, 1).
    Returns (encodings (B, T, H), new_history (1, B, H), None).
    """
    if history is not None:
        obs_seq = obs_seq[:, -1:]
        act_seq = act_seq[:, -1:]
        rew_seq = rew_seq[:, -1:]

    obs_seq = obs_seq.astype(jnp.float32)
    act_seq = act_seq.astype(jnp.float32)
    rew_seq = rew_seq.astype(jnp.float32)

    B, T, _ = obs_seq.shape
    H = params["w_hh"].shape[0]

    # Padded sizes: lane-dense hidden dim, sublane-dense batch.
    Hp = _round_up(H, 128)
    b_blk = _round_up(min(b_blk, _round_up(B, 8)), 8)
    Bp = _round_up(B, b_blk)

    # ---- Hoisted, time-independent input path (batched XLA matmuls) -------
    relu = jax.nn.relu
    eo = relu(obs_seq @ params["obs_w"] + params["obs_b"])          # (B, T, oe)
    ea = relu(act_seq @ params["act_w"] + params["act_b"])          # (B, T, ae)
    # rew encoder is a K=1 matmul == broadcast multiply-add (VPU, not MXU).
    er = relu(rew_seq * params["rew_w"][0] + params["rew_b"])       # (B, T, re)
    x = jnp.concatenate([eo, ea, er], axis=-1)                      # (B, T, E)
    if Bp != B:
        x = jnp.pad(x, ((0, Bp - B), (0, 0), (0, 0)))

    w_ih_gm, w_hh_gm, b_gi, b_hh_n = _prep_gru_params(params, H, Hp)

    # gi produced time-major + gate-major directly: no HBM relayout pass.
    gi = jnp.einsum("bte,eg->tbg", x, w_ih_gm) + b_gi               # (T, Bp, 3Hp)

    # Block the T axis; cap t_blk at T so the incremental (T=1) path runs a
    # true single-step kernel with no junk padded steps.
    t_blk_eff = max(1, min(t_blk, T))
    n_blk = pl.cdiv(T, t_blk_eff)
    T_pad = n_blk * t_blk_eff
    if T_pad != T:
        gi = jnp.pad(gi, ((0, T_pad - T), (0, 0), (0, 0)))

    # Initial hidden state, padded to (Bp, Hp); padded lanes/rows stay zero.
    if history is None:
        h0 = jnp.zeros((Bp, Hp), jnp.float32)
    else:
        h0 = jnp.zeros((Bp, Hp), jnp.float32).at[:B, :H].set(
            history[0].astype(jnp.float32))

    # Explicit VMEM budget (headroom under v7x's 64 MiB; conservatively assume
    # double-buffering everywhere in case Buffered(1) is unavailable).
    est_bytes = 4 * (2 * t_blk_eff * b_blk * 3 * Hp      # gi blocks
                     + 2 * t_blk_eff * b_blk * Hp        # enc blocks
                     + 2 * Hp * 3 * Hp                   # W_hh
                     + 2 * b_blk * Hp + 2 * Hp           # h0, b_hh_n
                     + b_blk * Hp)                       # h scratch
    vmem_limit = int(min(max(2 * est_bytes, 8 << 20), 56 << 20))

    enc_tm = pl.pallas_call(
        _gru_recurrence_kernel,
        out_shape=jax.ShapeDtypeStruct((T_pad, Bp, Hp), jnp.float32),
        grid_spec=pltpu.PrefetchScalarGridSpec(
            num_scalar_prefetch=0,
            grid=(Bp // b_blk, n_blk),
            in_specs=[
                pl.BlockSpec((t_blk_eff, b_blk, 3 * Hp), lambda b, t: (t, b, 0)),
                _resident_spec((b_blk, Hp), lambda b, t: (b, 0)),
                _resident_spec((Hp, 3 * Hp), lambda b, t: (0, 0)),
                _resident_spec((1, Hp), lambda b, t: (0, 0)),
            ],
            out_specs=pl.BlockSpec((t_blk_eff, b_blk, Hp), lambda b, t: (t, b, 0)),
            scratch_shapes=[pltpu.VMEM((b_blk, Hp), jnp.float32)],
        ),
        compiler_params=pltpu.CompilerParams(
            # Batch axis parallel (v7x megacore); T axis carries the hidden
            # state and must stay sequential.
            dimension_semantics=("parallel", "arbitrary"),
            vmem_limit_bytes=vmem_limit,
        ),
    )(gi, h0, w_hh_gm, b_hh_n)

    # Slice off padding and go batch-major.  (Writing the kernel output
    # batch-major directly would remove this HBM pass — v5e feedback — at the
    # cost of a dynamic sublane-offset store; kept here for robustness.)
    encodings = jnp.transpose(enc_tm[:T, :B, :H], (1, 0, 2))        # (B, T, H)
    new_history = encodings[:, -1][None]                            # (1, B, H)
    return encodings, new_history, None


# ---------------------------------------------------------------------------
# Deterministic parameter init (synthetic; mirrors the module's shapes/init).
# ---------------------------------------------------------------------------
def init_params(key, obs_dim, act_dim, oe, ae, re, H):
    E = oe + ae + re
    ks = jax.random.split(key, 8)
    ortho = jax.nn.initializers.orthogonal()
    unif = lambda k, shape, bound: jax.random.uniform(
        k, shape, jnp.float32, -bound, bound)
    return {
        # Linear encoders: stored pre-transposed (in, out) so we do x @ W.
        "obs_w": unif(ks[0], (obs_dim, oe), 1.0 / jnp.sqrt(obs_dim)),
        "obs_b": unif(ks[1], (1, oe), 1.0 / jnp.sqrt(obs_dim)),
        "act_w": unif(ks[2], (act_dim, ae), 1.0 / jnp.sqrt(act_dim)),
        "act_b": unif(ks[3], (1, ae), 1.0 / jnp.sqrt(act_dim)),
        "rew_w": unif(ks[4], (1, re), 1.0),
        "rew_b": unif(ks[5], (1, re), 1.0),
        # GRU: orthogonal weights, zero biases (as in the module __init__);
        # PyTorch stores (3H, in)/(3H, H) -> transpose to (in, 3H)/(H, 3H).
        "w_ih": ortho(ks[6], (3 * H, E)).T.astype(jnp.float32),
        "w_hh": ortho(ks[7], (3 * H, H)).T.astype(jnp.float32),
        "b_ih": jnp.zeros((1, 3 * H), jnp.float32),
        "b_hh": jnp.zeros((1, 3 * H), jnp.float32),
    }


# ---------------------------------------------------------------------------
# Pure-JAX reference (same math, lax.scan) for correctness check.
# ---------------------------------------------------------------------------
def reference_forward(params, obs_seq, act_seq, rew_seq, h0):
    relu = jax.nn.relu
    eo = relu(obs_seq @ params["obs_w"] + params["obs_b"])
    ea = relu(act_seq @ params["act_w"] + params["act_b"])
    er = relu(rew_seq @ params["rew_w"] + params["rew_b"])
    x = jnp.concatenate([eo, ea, er], axis=-1)
    H = params["w_hh"].shape[0]

    def step(h, xt):
        gi = xt @ params["w_ih"] + params["b_ih"]
        gh = h @ params["w_hh"] + params["b_hh"]
        r = jax.nn.sigmoid(gi[:, :H] + gh[:, :H])
        z = jax.nn.sigmoid(gi[:, H:2 * H] + gh[:, H:2 * H])
        n = jnp.tanh(gi[:, 2 * H:] + r * gh[:, 2 * H:])
        h_new = (1.0 - z) * n + z * h
        return h_new, h_new

    hN, ys = jax.lax.scan(step, h0, jnp.transpose(x, (1, 0, 2)))
    return jnp.transpose(ys, (1, 0, 2)), hN


if __name__ == "__main__":
    B, T = 2, 8
    obs_dim, act_dim = 12, 6
    oe, ae, re = 16, 8, 8          # obs/act/rew encode dims
    H = 32                         # rnn_hidden_size

    key = jax.random.PRNGKey(0)
    kp, ko, ka, kr = jax.random.split(key, 4)

    params = init_params(kp, obs_dim, act_dim, oe, ae, re, H)
    obs_seq = jax.random.normal(ko, (B, T, obs_dim), jnp.float32)
    act_seq = jax.random.normal(ka, (B, T, act_dim), jnp.float32)
    rew_seq = jax.random.normal(kr, (B, T, 1), jnp.float32)

    # Full-sequence encoding.
    enc, hist, _ = rnn_encoder_forward(params, obs_seq, act_seq, rew_seq)
    enc = jax.block_until_ready(enc)
    hist = jax.block_until_ready(hist)

    ref_enc, ref_hN = reference_forward(
        params, obs_seq, act_seq, rew_seq, jnp.zeros((B, H), jnp.float32))
    assert enc.shape == (B, T, H) and hist.shape == (1, B, H)
    assert jnp.allclose(enc, ref_enc, atol=1e-5, rtol=1e-5)
    assert jnp.allclose(hist[0], ref_hN, atol=1e-5, rtol=1e-5)

    # Incremental path: history provided -> encode only the last timestep
    # (runs a true single-step kernel, no padded junk steps).
    enc1, hist1, _ = rnn_encoder_forward(
        params, obs_seq, act_seq, rew_seq, history=hist)
    enc1 = jax.block_until_ready(enc1)
    ref_enc1, ref_h1 = reference_forward(
        params, obs_seq[:, -1:], act_seq[:, -1:], rew_seq[:, -1:], ref_hN)
    assert enc1.shape == (B, 1, H) and hist1.shape == (1, B, H)
    assert jnp.allclose(enc1, ref_enc1, atol=1e-5, rtol=1e-5)
    assert jnp.allclose(hist1[0], ref_h1, atol=1e-5, rtol=1e-5)

    print("KERNEL_OK")
</pallas_src>

<mosaic_0001>
module attributes {stable_mosaic.version = 11 : i64} {
  func.func @_gru_recurrence_kernel(%arg0: i32, %arg1: i32, %arg2: memref<8x8x384xf32, #tpu.memory_space<vmem>>, %arg3: memref<8x128xf32, #tpu.memory_space<vmem>>, %arg4: memref<128x384xf32, #tpu.memory_space<vmem>>, %arg5: memref<1x128xf32, #tpu.memory_space<vmem>>, %arg6: memref<8x8x128xf32, #tpu.memory_space<vmem>>, %arg7: memref<8x128xf32, #tpu.memory_space<vmem>>) attributes {dimension_semantics = [#tpu.dimension_semantics<parallel>, #tpu.dimension_semantics<arbitrary>], iteration_bounds = array<i64: 1, 1>, scalar_prefetch = 0 : i64, scratch_operands = 1 : i64, tpu.core_type = #tpu.core_type<tc>, window_params = [{transform_indices = @transform_0, window_bounds = array<i64: 8, 8, 384>}, {pipeline_mode = #tpu.pipeline_mode<synchronous>, transform_indices = @transform_1, window_bounds = array<i64: 8, 128>}, {pipeline_mode = #tpu.pipeline_mode<synchronous>, transform_indices = @transform_2, window_bounds = array<i64: 128, 384>}, {pipeline_mode = #tpu.pipeline_mode<synchronous>, transform_indices = @transform_3, window_bounds = array<i64: 1, 128>}, {transform_indices = @transform_4, window_bounds = array<i64: 8, 8, 128>}]} {
    %c0_i32 = arith.constant 0 : i32
    %0 = arith.cmpi eq, %arg1, %c0_i32 : i32
    %1 = arith.extui %0 : i1 to i32
    %c0_i32_0 = arith.constant 0 : i32
    %2 = arith.cmpi ne, %1, %c0_i32_0 : i32
    scf.if %2 {
      %c0_64 = arith.constant 0 : index
      %c0_65 = arith.constant 0 : index
      %279 = vector.load %arg3[%c0_64, %c0_65] : memref<8x128xf32, #tpu.memory_space<vmem>>, vector<8x128xf32>
      %c0_66 = arith.constant 0 : index
      %c0_67 = arith.constant 0 : index
      %280 = vector.load %arg7[%c0_66, %c0_67] : memref<8x128xf32, #tpu.memory_space<vmem>>, vector<8x128xf32>
      tpu.vector_store %arg7[%c0_66, %c0_67], %279 {strides = array<i32>} : memref<8x128xf32, #tpu.memory_space<vmem>>, vector<8x128xf32>,
    } else {
    }
    %c0 = arith.constant 0 : index
    %c0_1 = arith.constant 0 : index
    %3 = vector.load %arg4[%c0, %c0_1] : memref<128x384xf32, #tpu.memory_space<vmem>>, vector<128x384xf32>
    %c0_2 = arith.constant 0 : index
    %c0_3 = arith.constant 0 : index
    %4 = vector.load %arg5[%c0_2, %c0_3] : memref<1x128xf32, #tpu.memory_space<vmem>>, vector<1x128xf32>
    %c0_4 = arith.constant 0 : index
    %c0_5 = arith.constant 0 : index
    %5 = vector.load %arg7[%c0_4, %c0_5] : memref<8x128xf32, #tpu.memory_space<vmem>>, vector<8x128xf32>
    %c0_i32_6 = arith.constant 0 : i32
    %6 = arith.index_cast %c0_i32_6 : i32 to index
    %c0_7 = arith.constant 0 : index
    %c0_8 = arith.constant 0 : index
    %7 = vector.load %arg2[%6, %c0_7, %c0_8] : memref<8x8x384xf32, #tpu.memory_space<vmem>>, vector<1x8x384xf32>
    %8 = vector.shape_cast %7 : vector<1x8x384xf32> to vector<8x384xf32>
    %cst = arith.constant dense<0.000000e+00> : vector<8x384xf32>
    %9 = tpu.matmul %5, %3, %cst {dimension_numbers = #tpu.dot_dimension_numbers<[1], [0], [0], [1], [0, 0, 1, 1], [], []>} : vector<8x128xf32>, vector<128x384xf32>, vector<8x384xf32> -> vector<8x384xf32>
    %10 = vector.extract_strided_slice %8 {offsets = [0, 0], sizes = [8, 128], strides = [1, 1]} : vector<8x384xf32> to vector<8x128xf32>
    %11 = vector.extract_strided_slice %9 {offsets = [0, 0], sizes = [8, 128], strides = [1, 1]} : vector<8x384xf32> to vector<8x128xf32>
    %12 = arith.addf %10, %11 : vector<8x128xf32>
    %13 = arith.negf %12 : vector<8x128xf32>
    %14 = math.exp %13 : vector<8x128xf32>
    %cst_9 = arith.constant 1.000000e+00 : f32
    %15 = vector.broadcast %cst_9 : f32 to vector<8x128xf32>
    %16 = arith.addf %15, %14 : vector<8x128xf32>
    %17 = arith.divf %15, %16 : vector<8x128xf32>
    %18 = vector.extract_strided_slice %8 {offsets = [0, 128], sizes = [8, 128], strides = [1, 1]} : vector<8x384xf32> to vector<8x128xf32>
    %19 = vector.extract_strided_slice %9 {offsets = [0, 128], sizes = [8, 128], strides = [1, 1]} : vector<8x384xf32> to vector<8x128xf32>
    %20 = arith.addf %18, %19 : vector<8x128xf32>
    %21 = arith.negf %20 : vector<8x128xf32>
    %22 = math.exp %21 : vector<8x128xf32>
    %cst_10 = arith.constant 1.000000e+00 : f32
    %23 = vector.broadcast %cst_10 : f32 to vector<8x128xf32>
    %24 = arith.addf %23, %22 : vector<8x128xf32>
    %25 = arith.divf %23, %24 : vector<8x128xf32>
    %26 = vector.extract_strided_slice %8 {offsets = [0, 256], sizes = [8, 128], strides = [1, 1]} : vector<8x384xf32> to vector<8x128xf32>
    %27 = vector.extract_strided_slice %9 {offsets = [0, 256], sizes = [8, 128], strides = [1, 1]} : vector<8x384xf32> to vector<8x128xf32>
    %28 = vector.broadcast %4 : vector<1x128xf32> to vector<8x128xf32>
    %29 = arith.addf %27, %28 : vector<8x128xf32>
    %30 = arith.mulf %17, %29 : vector<8x128xf32>
    %31 = arith.addf %26, %30 : vector<8x128xf32>
    %32 = math.tanh %31 : vector<8x128xf32>
    %33 = arith.subf %5, %32 : vector<8x128xf32>
    %34 = arith.mulf %25, %33 : vector<8x128xf32>
    %35 = arith.addf %32, %34 : vector<8x128xf32>
    %36 = arith.index_cast %c0_i32_6 : i32 to index
    %c0_11 = arith.constant 0 : index
    %c0_12 = arith.constant 0 : index
    %37 = vector.load %arg6[%36, %c0_11, %c0_12] : memref<8x8x128xf32, #tpu.memory_space<vmem>>, vector<1x8x128xf32>
    %38 = vector.shape_cast %37 : vector<1x8x128xf32> to vector<8x128xf32>
    %39 = vector.shape_cast %35 : vector<8x128xf32> to vector<1x8x128xf32>
    tpu.vector_store %arg6[%36, %c0_11, %c0_12], %39 {strides = array<i32>} : memref<8x8x128xf32, #tpu.memory_space<vmem>>, vector<1x8x128xf32>,
    %c1_i32 = arith.constant 1 : i32
    %40 = arith.index_cast %c1_i32 : i32 to index
    %c0_13 = arith.constant 0 : index
    %c0_14 = arith.constant 0 : index
    %41 = vector.load %arg2[%40, %c0_13, %c0_14] : memref<8x8x384xf32, #tpu.memory_space<vmem>>, vector<1x8x384xf32>
    %42 = vector.shape_cast %41 : vector<1x8x384xf32> to vector<8x384xf32>
    %cst_15 = arith.constant dense<0.000000e+00> : vector<8x384xf32>
    %43 = tpu.matmul %35, %3, %cst_15 {dimension_numbers = #tpu.dot_dimension_numbers<[1], [0], [0], [1], [0, 0, 1, 1], [], []>} : vector<8x128xf32>, vector<128x384xf32>, vector<8x384xf32> -> vector<8x384xf32>
    %44 = vector.extract_strided_slice %42 {offsets = [0, 0], sizes = [8, 128], strides = [1, 1]} : vector<8x384xf32> to vector<8x128xf32>
    %45 = vector.extract_strided_slice %43 {offsets = [0, 0], sizes = [8, 128], strides = [1, 1]} : vector<8x384xf32> to vector<8x128xf32>
    %46 = arith.addf %44, %45 : vector<8x128xf32>
    %47 = arith.negf %46 : vector<8x128xf32>
    %48 = math.exp %47 : vector<8x128xf32>
    %cst_16 = arith.constant 1.000000e+00 : f32
    %49 = vector.broadcast %cst_16 : f32 to vector<8x128xf32>
    %50 = arith.addf %49, %48 : vector<8x128xf32>
    %51 = arith.divf %49, %50 : vector<8x128xf32>
    %52 = vector.extract_strided_slice %42 {offsets = [0, 128], sizes = [8, 128], strides = [1, 1]} : vector<8x384xf32> to vector<8x128xf32>
    %53 = vector.extract_strided_slice %43 {offsets = [0, 128], sizes = [8, 128], strides = [1, 1]} : vector<8x384xf32> to vector<8x128xf32>
    %54 = arith.addf %52, %53 : vector<8x128xf32>
    %55 = arith.negf %54 : vector<8x128xf32>
    %56 = math.exp %55 : vector<8x128xf32>
    %cst_17 = arith.constant 1.000000e+00 : f32
    %57 = vector.broadcast %cst_17 : f32 to vector<8x128xf32>
    %58 = arith.addf %57, %56 : vector<8x128xf32>
    %59 = arith.divf %57, %58 : vector<8x128xf32>
    %60 = vector.extract_strided_slice %42 {offsets = [0, 256], sizes = [8, 128], strides = [1, 1]} : vector<8x384xf32> to vector<8x128xf32>
    %61 = vector.extract_strided_slice %43 {offsets = [0, 256], sizes = [8, 128], strides = [1, 1]} : vector<8x384xf32> to vector<8x128xf32>
    %62 = vector.broadcast %4 : vector<1x128xf32> to vector<8x128xf32>
    %63 = arith.addf %61, %62 : vector<8x128xf32>
    %64 = arith.mulf %51, %63 : vector<8x128xf32>
    %65 = arith.addf %60, %64 : vector<8x128xf32>
    %66 = math.tanh %65 : vector<8x128xf32>
    %67 = arith.subf %35, %66 : vector<8x128xf32>
    %68 = arith.mulf %59, %67 : vector<8x128xf32>
    %69 = arith.addf %66, %68 : vector<8x128xf32>
    %70 = arith.index_cast %c1_i32 : i32 to index
    %c0_18 = arith.constant 0 : index
    %c0_19 = arith.constant 0 : index
    %71 = vector.load %arg6[%70, %c0_18, %c0_19] : memref<8x8x128xf32, #tpu.memory_space<vmem>>, vector<1x8x128xf32>
    %72 = vector.shape_cast %71 : vector<1x8x128xf32> to vector<8x128xf32>
    %73 = vector.shape_cast %69 : vector<8x128xf32> to vector<1x8x128xf32>
    tpu.vector_store %arg6[%70, %c0_18, %c0_19], %73 {strides = array<i32>} : memref<8x8x128xf32, #tpu.memory_space<vmem>>, vector<1x8x128xf32>,
    %c2_i32 = arith.constant 2 : i32
    %74 = arith.index_cast %c2_i32 : i32 to index
    %c0_20 = arith.constant 0 : index
    %c0_21 = arith.constant 0 : index
    %75 = vector.load %arg2[%74, %c0_20, %c0_21] : memref<8x8x384xf32, #tpu.memory_space<vmem>>, vector<1x8x384xf32>
    %76 = vector.shape_cast %75 : vector<1x8x384xf32> to vector<8x384xf32>
    %cst_22 = arith.constant dense<0.000000e+00> : vector<8x384xf32>
    %77 = tpu.matmul %69, %3, %cst_22 {dimension_numbers = #tpu.dot_dimension_numbers<[1], [0], [0], [1], [0, 0, 1, 1], [], []>} : vector<8x128xf32>, vector<128x384xf32>, vector<8x384xf32> -> vector<8x384xf32>
    %78 = vector.extract_strided_slice %76 {offsets = [0, 0], sizes = [8, 128], strides = [1, 1]} : vector<8x384xf32> to vector<8x128xf32>
    %79 = vector.extract_strided_slice %77 {offsets = [0, 0], sizes = [8, 128], strides = [1, 1]} : vector<8x384xf32> to vector<8x128xf32>
    %80 = arith.addf %78, %79 : vector<8x128xf32>
    %81 = arith.negf %80 : vector<8x128xf32>
    %82 = math.exp %81 : vector<8x128xf32>
    %cst_23 = arith.constant 1.000000e+00 : f32
    %83 = vector.broadcast %cst_23 : f32 to vector<8x128xf32>
    %84 = arith.addf %83, %82 : vector<8x128xf32>
    %85 = arith.divf %83, %84 : vector<8x128xf32>
    %86 = vector.extract_strided_slice %76 {offsets = [0, 128], sizes = [8, 128], strides = [1, 1]} : vector<8x384xf32> to vector<8x128xf32>
    %87 = vector.extract_strided_slice %77 {offsets = [0, 128], sizes = [8, 128], strides = [1, 1]} : vector<8x384xf32> to vector<8x128xf32>
    %88 = arith.addf %86, %87 : vector<8x128xf32>
    %89 = arith.negf %88 : vector<8x128xf32>
    %90 = math.exp %89 : vector<8x128xf32>
    %cst_24 = arith.constant 1.000000e+00 : f32
    %91 = vector.broadcast %cst_24 : f32 to vector<8x128xf32>
    %92 = arith.addf %91, %90 : vector<8x128xf32>
    %93 = arith.divf %91, %92 : vector<8x128xf32>
    %94 = vector.extract_strided_slice %76 {offsets = [0, 256], sizes = [8, 128], strides = [1, 1]} : vector<8x384xf32> to vector<8x128xf32>
    %95 = vector.extract_strided_slice %77 {offsets = [0, 256], sizes = [8, 128], strides = [1, 1]} : vector<8x384xf32> to vector<8x128xf32>
    %96 = vector.broadcast %4 : vector<1x128xf32> to vector<8x128xf32>
    %97 = arith.addf %95, %96 : vector<8x128xf32>
    %98 = arith.mulf %85, %97 : vector<8x128xf32>
    %99 = arith.addf %94, %98 : vector<8x128xf32>
    %100 = math.tanh %99 : vector<8x128xf32>
    %101 = arith.subf %69, %100 : vector<8x128xf32>
    %102 = arith.mulf %93, %101 : vector<8x128xf32>
    %103 = arith.addf %100, %102 : vector<8x128xf32>
    %104 = arith.index_cast %c2_i32 : i32 to index
    %c0_25 = arith.constant 0 : index
    %c0_26 = arith.constant 0 : index
    %105 = vector.load %arg6[%104, %c0_25, %c0_26] : memref<8x8x128xf32, #tpu.memory_space<vmem>>, vector<1x8x128xf32>
    %106 = vector.shape_cast %105 : vector<1x8x128xf32> to vector<8x128xf32>
    %107 = vector.shape_cast %103 : vector<8x128xf32> to vector<1x8x128xf32>
    tpu.vector_store %arg6[%104, %c0_25, %c0_26], %107 {strides = array<i32>} : memref<8x8x128xf32, #tpu.memory_space<vmem>>, vector<1x8x128xf32>,
    %c3_i32 = arith.constant 3 : i32
    %108 = arith.index_cast %c3_i32 : i32 to index
    %c0_27 = arith.constant 0 : index
    %c0_28 = arith.constant 0 : index
    %109 = vector.load %arg2[%108, %c0_27, %c0_28] : memref<8x8x384xf32, #tpu.memory_space<vmem>>, vector<1x8x384xf32>
    %110 = vector.shape_cast %109 : vector<1x8x384xf32> to vector<8x384xf32>
    %cst_29 = arith.constant dense<0.000000e+00> : vector<8x384xf32>
    %111 = tpu.matmul %103, %3, %cst_29 {dimension_numbers = #tpu.dot_dimension_numbers<[1], [0], [0], [1], [0, 0, 1, 1], [], []>} : vector<8x128xf32>, vector<128x384xf32>, vector<8x384xf32> -> vector<8x384xf32>
    %112 = vector.extract_strided_slice %110 {offsets = [0, 0], sizes = [8, 128], strides = [1, 1]} : vector<8x384xf32> to vector<8x128xf32>
    %113 = vector.extract_strided_slice %111 {offsets = [0, 0], sizes = [8, 128], strides = [1, 1]} : vector<8x384xf32> to vector<8x128xf32>
    %114 = arith.addf %112, %113 : vector<8x128xf32>
    %115 = arith.negf %114 : vector<8x128xf32>
    %116 = math.exp %115 : vector<8x128xf32>
    %cst_30 = arith.constant 1.000000e+00 : f32
    %117 = vector.broadcast %cst_30 : f32 to vector<8x128xf32>
    %118 = arith.addf %117, %116 : vector<8x128xf32>
    %119 = arith.divf %117, %118 : vector<8x128xf32>
    %120 = vector.extract_strided_slice %110 {offsets = [0, 128], sizes = [8, 128], strides = [1, 1]} : vector<8x384xf32> to vector<8x128xf32>
    %121 = vector.extract_strided_slice %111 {offsets = [0, 128], sizes = [8, 128], strides = [1, 1]} : vector<8x384xf32> to vector<8x128xf32>
    %122 = arith.addf %120, %121 : vector<8x128xf32>
    %123 = arith.negf %122 : vector<8x128xf32>
    %124 = math.exp %123 : vector<8x128xf32>
    %cst_31 = arith.constant 1.000000e+00 : f32
    %125 = vector.broadcast %cst_31 : f32 to vector<8x128xf32>
    %126 = arith.addf %125, %124 : vector<8x128xf32>
    %127 = arith.divf %125, %126 : vector<8x128xf32>
    %128 = vector.extract_strided_slice %110 {offsets = [0, 256], sizes = [8, 128], strides = [1, 1]} : vector<8x384xf32> to vector<8x128xf32>
    %129 = vector.extract_strided_slice %111 {offsets = [0, 256], sizes = [8, 128], strides = [1, 1]} : vector<8x384xf32> to vector<8x128xf32>
    %130 = vector.broadcast %4 : vector<1x128xf32> to vector<8x128xf32>
    %131 = arith.addf %129, %130 : vector<8x128xf32>
    %132 = arith.mulf %119, %131 : vector<8x128xf32>
    %133 = arith.addf %128, %132 : vector<8x128xf32>
    %134 = math.tanh %133 : vector<8x128xf32>
    %135 = arith.subf %103, %134 : vector<8x128xf32>
    %136 = arith.mulf %127, %135 : vector<8x128xf32>
    %137 = arith.addf %134, %136 : vector<8x128xf32>
    %138 = arith.index_cast %c3_i32 : i32 to index
    %c0_32 = arith.constant 0 : index
    %c0_33 = arith.constant 0 : index
    %139 = vector.load %arg6[%138, %c0_32, %c0_33] : memref<8x8x128xf32, #tpu.memory_space<vmem>>, vector<1x8x128xf32>
    %140 = vector.shape_cast %139 : vector<1x8x128xf32> to vector<8x128xf32>
    %141 = vector.shape_cast %137 : vector<8x128xf32> to vector<1x8x128xf32>
    tpu.vector_store %arg6[%138, %c0_32, %c0_33], %141 {strides = array<i32>} : memref<8x8x128xf32, #tpu.memory_space<vmem>>, vector<1x8x128xf32>,
    %c4_i32 = arith.constant 4 : i32
    %142 = arith.index_cast %c4_i32 : i32 to index
    %c0_34 = arith.constant 0 : index
    %c0_35 = arith.constant 0 : index
    %143 = vector.load %arg2[%142, %c0_34, %c0_35] : memref<8x8x384xf32, #tpu.memory_space<vmem>>, vector<1x8x384xf32>
    %144 = vector.shape_cast %143 : vector<1x8x384xf32> to vector<8x384xf32>
    %cst_36 = arith.constant dense<0.000000e+00> : vector<8x384xf32>
    %145 = tpu.matmul %137, %3, %cst_36 {dimension_numbers = #tpu.dot_dimension_numbers<[1], [0], [0], [1], [0, 0, 1, 1], [], []>} : vector<8x128xf32>, vector<128x384xf32>, vector<8x384xf32> -> vector<8x384xf32>
    %146 = vector.extract_strided_slice %144 {offsets = [0, 0], sizes = [8, 128], strides = [1, 1]} : vector<8x384xf32> to vector<8x128xf32>
    %147 = vector.extract_strided_slice %145 {offsets = [0, 0], sizes = [8, 128], strides = [1, 1]} : vector<8x384xf32> to vector<8x128xf32>
    %148 = arith.addf %146, %147 : vector<8x128xf32>
    %149 = arith.negf %148 : vector<8x128xf32>
    %150 = math.exp %149 : vector<8x128xf32>
    %cst_37 = arith.constant 1.000000e+00 : f32
    %151 = vector.broadcast %cst_37 : f32 to vector<8x128xf32>
    %152 = arith.addf %151, %150 : vector<8x128xf32>
    %153 = arith.divf %151, %152 : vector<8x128xf32>
    %154 = vector.extract_strided_slice %144 {offsets = [0, 128], sizes = [8, 128], strides = [1, 1]} : vector<8x384xf32> to vector<8x128xf32>
    %155 = vector.extract_strided_slice %145 {offsets = [0, 128], sizes = [8, 128], strides = [1, 1]} : vector<8x384xf32> to vector<8x128xf32>
    %156 = arith.addf %154, %155 : vector<8x128xf32>
    %157 = arith.negf %156 : vector<8x128xf32>
    %158 = math.exp %157 : vector<8x128xf32>
    %cst_38 = arith.constant 1.000000e+00 : f32
    %159 = vector.broadcast %cst_38 : f32 to vector<8x128xf32>
    %160 = arith.addf %159, %158 : vector<8x128xf32>
    %161 = arith.divf %159, %160 : vector<8x128xf32>
    %162 = vector.extract_strided_slice %144 {offsets = [0, 256], sizes = [8, 128], strides = [1, 1]} : vector<8x384xf32> to vector<8x128xf32>
    %163 = vector.extract_strided_slice %145 {offsets = [0, 256], sizes = [8, 128], strides = [1, 1]} : vector<8x384xf32> to vector<8x128xf32>
    %164 = vector.broadcast %4 : vector<1x128xf32> to vector<8x128xf32>
    %165 = arith.addf %163, %164 : vector<8x128xf32>
    %166 = arith.mulf %153, %165 : vector<8x128xf32>
    %167 = arith.addf %162, %166 : vector<8x128xf32>
    %168 = math.tanh %167 : vector<8x128xf32>
    %169 = arith.subf %137, %168 : vector<8x128xf32>
    %170 = arith.mulf %161, %169 : vector<8x128xf32>
    %171 = arith.addf %168, %170 : vector<8x128xf32>
    %172 = arith.index_cast %c4_i32 : i32 to index
    %c0_39 = arith.constant 0 : index
    %c0_40 = arith.constant 0 : index
    %173 = vector.load %arg6[%172, %c0_39, %c0_40] : memref<8x8x128xf32, #tpu.memory_space<vmem>>, vector<1x8x128xf32>
    %174 = vector.shape_cast %173 : vector<1x8x128xf32> to vector<8x128xf32>
    %175 = vector.shape_cast %171 : vector<8x128xf32> to vector<1x8x128xf32>
    tpu.vector_store %arg6[%172, %c0_39, %c0_40], %175 {strides = array<i32>} : memref<8x8x128xf32, #tpu.memory_space<vmem>>, vector<1x8x128xf32>,
    %c5_i32 = arith.constant 5 : i32
    %176 = arith.index_cast %c5_i32 : i32 to index
    %c0_41 = arith.constant 0 : index
    %c0_42 = arith.constant 0 : index
    %177 = vector.load %arg2[%176, %c0_41, %c0_42] : memref<8x8x384xf32, #tpu.memory_space<vmem>>, vector<1x8x384xf32>
    %178 = vector.shape_cast %177 : vector<1x8x384xf32> to vector<8x384xf32>
    %cst_43 = arith.constant dense<0.000000e+00> : vector<8x384xf32>
    %179 = tpu.matmul %171, %3, %cst_43 {dimension_numbers = #tpu.dot_dimension_numbers<[1], [0], [0], [1], [0, 0, 1, 1], [], []>} : vector<8x128xf32>, vector<128x384xf32>, vector<8x384xf32> -> vector<8x384xf32>
    %180 = vector.extract_strided_slice %178 {offsets = [0, 0], sizes = [8, 128], strides = [1, 1]} : vector<8x384xf32> to vector<8x128xf32>
    %181 = vector.extract_strided_slice %179 {offsets = [0, 0], sizes = [8, 128], strides = [1, 1]} : vector<8x384xf32> to vector<8x128xf32>
    %182 = arith.addf %180, %181 : vector<8x128xf32>
    %183 = arith.negf %182 : vector<8x128xf32>
    %184 = math.exp %183 : vector<8x128xf32>
    %cst_44 = arith.constant 1.000000e+00 : f32
    %185 = vector.broadcast %cst_44 : f32 to vector<8x128xf32>
    %186 = arith.addf %185, %184 : vector<8x128xf32>
    %187 = arith.divf %185, %186 : vector<8x128xf32>
    %188 = vector.extract_strided_slice %178 {offsets = [0, 128], sizes = [8, 128], strides = [1, 1]} : vector<8x384xf32> to vector<8x128xf32>
    %189 = vector.extract_strided_slice %179 {offsets = [0, 128], sizes = [8, 128], strides = [1, 1]} : vector<8x384xf32> to vector<8x128xf32>
    %190 = arith.addf %188, %189 : vector<8x128xf32>
    %191 = arith.negf %190 : vector<8x128xf32>
    %192 = math.exp %191 : vector<8x128xf32>
    %cst_45 = arith.constant 1.000000e+00 : f32
    %193 = vector.broadcast %cst_45 : f32 to vector<8x128xf32>
    %194 = arith.addf %193, %192 : vector<8x128xf32>
    %195 = arith.divf %193, %194 : vector<8x128xf32>
    %196 = vector.extract_strided_slice %178 {offsets = [0, 256], sizes = [8, 128], strides = [1, 1]} : vector<8x384xf32> to vector<8x128xf32>
    %197 = vector.extract_strided_slice %179 {offsets = [0, 256], sizes = [8, 128], strides = [1, 1]} : vector<8x384xf32> to vector<8x128xf32>
    %198 = vector.broadcast %4 : vector<1x128xf32> to vector<8x128xf32>
    %199 = arith.addf %197, %198 : vector<8x128xf32>
    %200 = arith.mulf %187, %199 : vector<8x128xf32>
    %201 = arith.addf %196, %200 : vector<8x128xf32>
    %202 = math.tanh %201 : vector<8x128xf32>
    %203 = arith.subf %171, %202 : vector<8x128xf32>
    %204 = arith.mulf %195, %203 : vector<8x128xf32>
    %205 = arith.addf %202, %204 : vector<8x128xf32>
    %206 = arith.index_cast %c5_i32 : i32 to index
    %c0_46 = arith.constant 0 : index
    %c0_47 = arith.constant 0 : index
    %207 = vector.load %arg6[%206, %c0_46, %c0_47] : memref<8x8x128xf32, #tpu.memory_space<vmem>>, vector<1x8x128xf32>
    %208 = vector.shape_cast %207 : vector<1x8x128xf32> to vector<8x128xf32>
    %209 = vector.shape_cast %205 : vector<8x128xf32> to vector<1x8x128xf32>
    tpu.vector_store %arg6[%206, %c0_46, %c0_47], %209 {strides = array<i32>} : memref<8x8x128xf32, #tpu.memory_space<vmem>>, vector<1x8x128xf32>,
    %c6_i32 = arith.constant 6 : i32
    %210 = arith.index_cast %c6_i32 : i32 to index
    %c0_48 = arith.constant 0 : index
    %c0_49 = arith.constant 0 : index
    %211 = vector.load %arg2[%210, %c0_48, %c0_49] : memref<8x8x384xf32, #tpu.memory_space<vmem>>, vector<1x8x384xf32>
    %212 = vector.shape_cast %211 : vector<1x8x384xf32> to vector<8x384xf32>
    %cst_50 = arith.constant dense<0.000000e+00> : vector<8x384xf32>
    %213 = tpu.matmul %205, %3, %cst_50 {dimension_numbers = #tpu.dot_dimension_numbers<[1], [0], [0], [1], [0, 0, 1, 1], [], []>} : vector<8x128xf32>, vector<128x384xf32>, vector<8x384xf32> -> vector<8x384xf32>
    %214 = vector.extract_strided_slice %212 {offsets = [0, 0], sizes = [8, 128], strides = [1, 1]} : vector<8x384xf32> to vector<8x128xf32>
    %215 = vector.extract_strided_slice %213 {offsets = [0, 0], sizes = [8, 128], strides = [1, 1]} : vector<8x384xf32> to vector<8x128xf32>
    %216 = arith.addf %214, %215 : vector<8x128xf32>
    %217 = arith.negf %216 : vector<8x128xf32>
    %218 = math.exp %217 : vector<8x128xf32>
    %cst_51 = arith.constant 1.000000e+00 : f32
    %219 = vector.broadcast %cst_51 : f32 to vector<8x128xf32>
    %220 = arith.addf %219, %218 : vector<8x128xf32>
    %221 = arith.divf %219, %220 : vector<8x128xf32>
    %222 = vector.extract_strided_slice %212 {offsets = [0, 128], sizes = [8, 128], strides = [1, 1]} : vector<8x384xf32> to vector<8x128xf32>
    %223 = vector.extract_strided_slice %213 {offsets = [0, 128], sizes = [8, 128], strides = [1, 1]} : vector<8x384xf32> to vector<8x128xf32>
    %224 = arith.addf %222, %223 : vector<8x128xf32>
    %225 = arith.negf %224 : vector<8x128xf32>
    %226 = math.exp %225 : vector<8x128xf32>
    %cst_52 = arith.constant 1.000000e+00 : f32
    %227 = vector.broadcast %cst_52 : f32 to vector<8x128xf32>
    %228 = arith.addf %227, %226 : vector<8x128xf32>
    %229 = arith.divf %227, %228 : vector<8x128xf32>
    %230 = vector.extract_strided_slice %212 {offsets = [0, 256], sizes = [8, 128], strides = [1, 1]} : vector<8x384xf32> to vector<8x128xf32>
    %231 = vector.extract_strided_slice %213 {offsets = [0, 256], sizes = [8, 128], strides = [1, 1]} : vector<8x384xf32> to vector<8x128xf32>
    %232 = vector.broadcast %4 : vector<1x128xf32> to vector<8x128xf32>
    %233 = arith.addf %231, %232 : vector<8x128xf32>
    %234 = arith.mulf %221, %233 : vector<8x128xf32>
    %235 = arith.addf %230, %234 : vector<8x128xf32>
    %236 = math.tanh %235 : vector<8x128xf32>
    %237 = arith.subf %205, %236 : vector<8x128xf32>
    %238 = arith.mulf %229, %237 : vector<8x128xf32>
    %239 = arith.addf %236, %238 : vector<8x128xf32>
    %240 = arith.index_cast %c6_i32 : i32 to index
    %c0_53 = arith.constant 0 : index
    %c0_54 = arith.constant 0 : index
    %241 = vector.load %arg6[%240, %c0_53, %c0_54] : memref<8x8x128xf32, #tpu.memory_space<vmem>>, vector<1x8x128xf32>
    %242 = vector.shape_cast %241 : vector<1x8x128xf32> to vector<8x128xf32>
    %243 = vector.shape_cast %239 : vector<8x128xf32> to vector<1x8x128xf32>
    tpu.vector_store %arg6[%240, %c0_53, %c0_54], %243 {strides = array<i32>} : memref<8x8x128xf32, #tpu.memory_space<vmem>>, vector<1x8x128xf32>,
    %c7_i32 = arith.constant 7 : i32
    %244 = arith.index_cast %c7_i32 : i32 to index
    %c0_55 = arith.constant 0 : index
    %c0_56 = arith.constant 0 : index
    %245 = vector.load %arg2[%244, %c0_55, %c0_56] : memref<8x8x384xf32, #tpu.memory_space<vmem>>, vector<1x8x384xf32>
    %246 = vector.shape_cast %245 : vector<1x8x384xf32> to vector<8x384xf32>
    %cst_57 = arith.constant dense<0.000000e+00> : vector<8x384xf32>
    %247 = tpu.matmul %239, %3, %cst_57 {dimension_numbers = #tpu.dot_dimension_numbers<[1], [0], [0], [1], [0, 0, 1, 1], [], []>} : vector<8x128xf32>, vector<128x384xf32>, vector<8x384xf32> -> vector<8x384xf32>
    %248 = vector.extract_strided_slice %246 {offsets = [0, 0], sizes = [8, 128], strides = [1, 1]} : vector<8x384xf32> to vector<8x128xf32>
    %249 = vector.extract_strided_slice %247 {offsets = [0, 0], sizes = [8, 128], strides = [1, 1]} : vector<8x384xf32> to vector<8x128xf32>
    %250 = arith.addf %248, %249 : vector<8x128xf32>
    %251 = arith.negf %250 : vector<8x128xf32>
    %252 = math.exp %251 : vector<8x128xf32>
    %cst_58 = arith.constant 1.000000e+00 : f32
    %253 = vector.broadcast %cst_58 : f32 to vector<8x128xf32>
    %254 = arith.addf %253, %252 : vector<8x128xf32>
    %255 = arith.divf %253, %254 : vector<8x128xf32>
    %256 = vector.extract_strided_slice %246 {offsets = [0, 128], sizes = [8, 128], strides = [1, 1]} : vector<8x384xf32> to vector<8x128xf32>
    %257 = vector.extract_strided_slice %247 {offsets = [0, 128], sizes = [8, 128], strides = [1, 1]} : vector<8x384xf32> to vector<8x128xf32>
    %258 = arith.addf %256, %257 : vector<8x128xf32>
    %259 = arith.negf %258 : vector<8x128xf32>
    %260 = math.exp %259 : vector<8x128xf32>
    %cst_59 = arith.constant 1.000000e+00 : f32
    %261 = vector.broadcast %cst_59 : f32 to vector<8x128xf32>
    %262 = arith.addf %261, %260 : vector<8x128xf32>
    %263 = arith.divf %261, %262 : vector<8x128xf32>
    %264 = vector.extract_strided_slice %246 {offsets = [0, 256], sizes = [8, 128], strides = [1, 1]} : vector<8x384xf32> to vector<8x128xf32>
    %265 = vector.extract_strided_slice %247 {offsets = [0, 256], sizes = [8, 128], strides = [1, 1]} : vector<8x384xf32> to vector<8x128xf32>
    %266 = vector.broadcast %4 : vector<1x128xf32> to vector<8x128xf32>
    %267 = arith.addf %265, %266 : vector<8x128xf32>
    %268 = arith.mulf %255, %267 : vector<8x128xf32>
    %269 = arith.addf %264, %268 : vector<8x128xf32>
    %270 = math.tanh %269 : vector<8x128xf32>
    %271 = arith.subf %239, %270 : vector<8x128xf32>
    %272 = arith.mulf %263, %271 : vector<8x128xf32>
    %273 = arith.addf %270, %272 : vector<8x128xf32>
    %274 = arith.index_cast %c7_i32 : i32 to index
    %c0_60 = arith.constant 0 : index
    %c0_61 = arith.constant 0 : index
    %275 = vector.load %arg6[%274, %c0_60, %c0_61] : memref<8x8x128xf32, #tpu.memory_space<vmem>>, vector<1x8x128xf32>
    %276 = vector.shape_cast %275 : vector<1x8x128xf32> to vector<8x128xf32>
    %277 = vector.shape_cast %273 : vector<8x128xf32> to vector<1x8x128xf32>
    tpu.vector_store %arg6[%274, %c0_60, %c0_61], %277 {strides = array<i32>} : memref<8x8x128xf32, #tpu.memory_space<vmem>>, vector<1x8x128xf32>,
    %c8_i32 = arith.constant 8 : i32
    %c0_62 = arith.constant 0 : index
    %c0_63 = arith.constant 0 : index
    %278 = vector.load %arg7[%c0_62, %c0_63] : memref<8x128xf32, #tpu.memory_space<vmem>>, vector<8x128xf32>
    tpu.vector_store %arg7[%c0_62, %c0_63], %273 {strides = array<i32>} : memref<8x128xf32, #tpu.memory_space<vmem>>, vector<8x128xf32>,
    return
  }
  func.func @transform_0(%arg0: i32, %arg1: i32) -> (i32, i32, i32) {
    %c0_i32 = arith.constant 0 : i32
    %c0_i32_0 = arith.constant 0 : i32
    return %arg1, %arg0, %c0_i32 : i32, i32, i32
  }
  func.func @transform_1(%arg0: i32, %arg1: i32) -> (i32, i32) {
    %c0_i32 = arith.constant 0 : i32
    %c0_i32_0 = arith.constant 0 : i32
    return %arg0, %c0_i32 : i32, i32
  }
  func.func @transform_2(%arg0: i32, %arg1: i32) -> (i32, i32) {
    %c0_i32 = arith.constant 0 : i32
    %c0_i32_0 = arith.constant 0 : i32
    %c0_i32_1 = arith.constant 0 : i32
    return %c0_i32, %c0_i32_0 : i32, i32
  }
  func.func @transform_3(%arg0: i32, %arg1: i32) -> (i32, i32) {
    %c0_i32 = arith.constant 0 : i32
    %c0_i32_0 = arith.constant 0 : i32
    %c0_i32_1 = arith.constant 0 : i32
    return %c0_i32, %c0_i32_0 : i32, i32
  }
  func.func @transform_4(%arg0: i32, %arg1: i32) -> (i32, i32, i32) {
    %c0_i32 = arith.constant 0 : i32
    %c0_i32_0 = arith.constant 0 : i32
    return %arg1, %arg0, %c0_i32 : i32, i32, i32
  }
}

</mosaic_0001>

<llo_original>
// kernel: rnn_encoder_forward.1
$region0: #{rnn_encoder_forward.1}
  #allocation0 [shape = 'u32[]', space=smem, size = 0x4, offset = 0x4, fixed_abs, tag = 'smem constant byte address 0x4 - core index']
  #allocation1 [shape = 'u32[72,128]{1,0:T(1,128)}', space=vmem, size = 0x9000, scoped, tag = 'internal scratch']
  #allocation2 [shape = 'f32[8,128]{1,0:T(8,128)}', space=vmem, size = 0x1000, scoped, tag = 'scratch operand']
  %s0 = inlined_call_operand.vmem [shape: f32[8,8,384], index: 0, kind: input, shape index: {}]
  %s1 = inlined_call_operand.vmem [shape: f32[8,128], index: 1, kind: input, shape index: {}]
  %s2 = inlined_call_operand.vmem [shape: f32[128,384], index: 2, kind: input, shape index: {}]
  %s3 = inlined_call_operand.vmem [shape: f32[1,128], index: 3, kind: input, shape index: {}]
  %s4 = inlined_call_operand.vmem [shape: f32[8,8,128], index: 4, kind: output, shape index: {}]
  %s5 = sld [smem:[#allocation0]]
  $region30: #{rnn_encoder_forward.1} parent=0
    _
  %s7 = ssub.s32 1, %s5
  %s8 = scalar_select 0, %s7, %s5
  // Predicated region
  $region2: #{rnn_encoder_forward.1} parent=0 // pred_check
    _
  $region3: #{rnn_encoder_forward.1} parent=0 // pred_check_branch
    %10 = sbr.rel (0) target = $region5
  $region4: #{rnn_encoder_forward.1} parent=0 // pred_region
    _
  $region5: #{rnn_encoder_forward.1} parent=0 // pred_fallthru
    _
  // Predicated region
  $region6: #{rnn_encoder_forward.1} parent=0 // pred_check
    _
  $region7: #{rnn_encoder_forward.1} parent=0 // pred_check_branch
    %12 = sbr.rel (0) target = $region9
  $region8: #{rnn_encoder_forward.1} parent=0 // pred_region
    _
  $region9: #{rnn_encoder_forward.1} parent=0 // pred_fallthru
    _
  // Predicated region
  $region10: #{rnn_encoder_forward.1} parent=0 // pred_check
    _
  $region11: #{rnn_encoder_forward.1} parent=0 // pred_check_branch
    %14 = sbr.rel (0) target = $region13
  $region12: #{rnn_encoder_forward.1} parent=0 // pred_region
    _
  $region13: #{rnn_encoder_forward.1} parent=0 // pred_fallthru
    _
  // Predicated region
  $region14: #{rnn_encoder_forward.1} parent=0 // pred_check
    _
  $region15: #{rnn_encoder_forward.1} parent=0 // pred_check_branch
    %16 = sbr.rel (0) target = $region17
  $region16: #{rnn_encoder_forward.1} parent=0 // pred_region
    _
  $region17: #{rnn_encoder_forward.1} parent=0 // pred_fallthru
    _
  %p17 = scmp.eq.s32.totalorder 0, 0
  // Predicated region
  $region18: #{rnn_encoder_forward.1} parent=0 // pred_check
    %p18 = pneg %p17
  $region19: #{rnn_encoder_forward.1} parent=0 // pred_check_branch
    %20 = sbr.rel (%p18) target = $region21
  $region20: #{rnn_encoder_forward.1} parent=0 // pred_region
    %v21 = vld [vmem:[%s1] sm:$0xff]
    %22 = vst [vmem:[#allocation2] sm:$0xff] %v21
  $region21: #{rnn_encoder_forward.1} parent=0 // pred_fallthru
    _
  %v23 = vld [vmem:[%s2] sm:$0xff]
  %v24 = vld [vmem:[%s2 + $0x8] sm:$0xff]
  %v25 = vld [vmem:[%s2 + $0x10] sm:$0xff]
  %v26 = vld [vmem:[%s2 + $0x18] sm:$0xff]
  %v27 = vld [vmem:[%s2 + $0x20] sm:$0xff]
  %v28 = vld [vmem:[%s2 + $0x28] sm:$0xff]
  %v29 = vld [vmem:[%s2 + $0x30] sm:$0xff]
  %v30 = vld [vmem:[%s2 + $0x38] sm:$0xff]
  %v31 = vld [vmem:[%s2 + $0x40] sm:$0xff]
  %v32 = vld [vmem:[%s2 + $0x48] sm:$0xff]
  %v33 = vld [vmem:[%s2 + $0x50] sm:$0xff]
  %v34 = vld [vmem:[%s2 + $0x58] sm:$0xff]
  %v35 = vld [vmem:[%s2 + $0x60] sm:$0xff]
  %v36 = vld [vmem:[%s2 + $0x68] sm:$0xff]
  %v37 = vld [vmem:[%s2 + $0x70] sm:$0xff]
  %v38 = vld [vmem:[%s2 + $0x78] sm:$0xff]
  %v39 = vld [vmem:[%s2 + $0x80] sm:$0xff]
  %v40 = vld [vmem:[%s2 + $0x88] sm:$0xff]
  %v41 = vld [vmem:[%s2 + $0x90] sm:$0xff]
  %v42 = vld [vmem:[%s2 + $0x98] sm:$0xff]
  %v43 = vld [vmem:[%s2 + $0xa0] sm:$0xff]
  %v44 = vld [vmem:[%s2 + $0xa8] sm:$0xff]
  %v45 = vld [vmem:[%s2 + $0xb0] sm:$0xff]
  %v46 = vld [vmem:[%s2 + $0xb8] sm:$0xff]
  %v47 = vld [vmem:[%s2 + $0xc0] sm:$0xff]
  %v48 = vld [vmem:[%s2 + $0xc8] sm:$0xff]
  %v49 = vld [vmem:[%s2 + $0xd0] sm:$0xff]
  %v50 = vld [vmem:[%s2 + $0xd8] sm:$0xff]
  %v51 = vld [vmem:[%s2 + $0xe0] sm:$0xff]
  %v52 = vld [vmem:[%s2 + $0xe8] sm:$0xff]
  %v53 = vld [vmem:[%s2 + $0xf0] sm:$0xff]
  %v54 = vld [vmem:[%s2 + $0xf8] sm:$0xff]
  %v55 = vld [vmem:[%s2 + $0x100] sm:$0xff]
  %v56 = vld [vmem:[%s2 + $0x108] sm:$0xff]
  %v57 = vld [vmem:[%s2 + $0x110] sm:$0xff]
  %v58 = vld [vmem:[%s2 + $0x118] sm:$0xff]
  %v59 = vld [vmem:[%s2 + $0x120] sm:$0xff]
  %v60 = vld [vmem:[%s2 + $0x128] sm:$0xff]
  %v61 = vld [vmem:[%s2 + $0x130] sm:$0xff]
  %v62 = vld [vmem:[%s2 + $0x138] sm:$0xff]
  %v63 = vld [vmem:[%s2 + $0x140] sm:$0xff]
  %v64 = vld [vmem:[%s2 + $0x148] sm:$0xff]
  %v65 = vld [vmem:[%s2 + $0x150] sm:$0xff]
  %v66 = vld [vmem:[%s2 + $0x158] sm:$0xff]
  %v67 = vld [vmem:[%s2 + $0x160] sm:$0xff]
  %v68 = vld [vmem:[%s2 + $0x168] sm:$0xff]
  %v69 = vld [vmem:[%s2 + $0x170] sm:$0xff]
  %v70 = vld [vmem:[%s2 + $0x178] sm:$0xff]
  %v71 = vld [vmem:[%s3] sm:$0x1]
  %v72 = vld [vmem:[#allocation2] sm:$0xff]
  %v73 = vld [vmem:[%s0] sm:$0xff]
  %v74 = vld [vmem:[%s0 + $0x8] sm:$0xff]
  %v75 = vld [vmem:[%s0 + $0x10] sm:$0xff]
  %76 = vmatpush.msra.mxu0 %v68
  %77 = vmatpush.msra.mxu0 %v65
  %78 = vmatpush.msra.mxu0 %v62
  %79 = vmatpush.msra.mxu0 %v59
  %80 = vmatpush.msra.mxu0 %v56
  %81 = vmatpush.msra.mxu0 %v53
  %82 = vmatpush.msra.mxu0 %v50
  %83 = vmatpush.msra.mxu0 %v47
  %84 = vmatpush.msra.mxu0 %v44
  %85 = vmatpush.msra.mxu0 %v41
  %86 = vmatpush.msra.mxu0 %v38
  %87 = vmatpush.msra.mxu0 %v35
  %88 = vmatpush.msra.mxu0 %v32
  %89 = vmatpush.msra.mxu0 %v29
  %90 = vmatpush.msra.mxu0 %v26
  %91 = vmatpush.msra.mxu0 %v23
  %92 = vmatmul.f32.gmra.mxu0 %v72
  %v93 = vpop.f32.mrf.mxu0
  %v94 = vadd.f32 0.0, %v93
  %95 = vdwg.mxu0
  %96 = vmatpush.msra.mxu0 %v69
  %97 = vmatpush.msra.mxu0 %v66
  %98 = vmatpush.msra.mxu0 %v63
  %99 = vmatpush.msra.mxu0 %v60
  %100 = vmatpush.msra.mxu0 %v57
  %101 = vmatpush.msra.mxu0 %v54
  %102 = vmatpush.msra.mxu0 %v51
  %103 = vmatpush.msra.mxu0 %v48
  %104 = vmatpush.msra.mxu0 %v45
  %105 = vmatpush.msra.mxu0 %v42
  %106 = vmatpush.msra.mxu0 %v39
  %107 = vmatpush.msra.mxu0 %v36
  %108 = vmatpush.msra.mxu0 %v33
  %109 = vmatpush.msra.mxu0 %v30
  %110 = vmatpush.msra.mxu0 %v27
  %111 = vmatpush.msra.mxu0 %v24
  %112 = vmatmul.f32.gmra.mxu0 %v72
  %v113 = vpop.f32.mrf.mxu0
  %v114 = vadd.f32 0.0, %v113
  %115 = vdwg.mxu0
  %116 = vmatpush.msra.mxu0 %v70
  %117 = vmatpush.msra.mxu0 %v67
  %118 = vmatpush.msra.mxu0 %v64
  %119 = vmatpush.msra.mxu0 %v61
  %120 = vmatpush.msra.mxu0 %v58
  %121 = vmatpush.msra.mxu0 %v55
  %122 = vmatpush.msra.mxu0 %v52
  %123 = vmatpush.msra.mxu0 %v49
  %124 = vmatpush.msra.mxu0 %v46
  %125 = vmatpush.msra.mxu0 %v43
  %126 = vmatpush.msra.mxu0 %v40
  %127 = vmatpush.msra.mxu0 %v37
  %128 = vmatpush.msra.mxu0 %v34
  %129 = vmatpush.msra.mxu0 %v31
  %130 = vmatpush.msra.mxu0 %v28
  %131 = vmatpush.msra.mxu0 %v25
  %132 = vmatmul.f32.gmra.mxu0 %v72
  %v133 = vpop.f32.mrf.mxu0
  %v134 = vadd.f32 0.0, %v133
  %135 = vdwg.mxu0
  %v136 = vadd.f32 %v73, %v94
  %v137 = vxor.u32 %v136, 2147483648
  %v138 = vmul.f32 %v137, 1.442695
  %v139 = vpow.pop %v138
  %v140 = vadd.f32 %v139, 1.0
  %v141 = vrcp.pop %v140
  %v142 = vmul.f32 %v140, %v141
  %v143 = vsub.f32 1.0, %v142
  %v144 = vmul.f32 %v141, %v143
  %v145 = vadd.f32 %v141, %v144
  %vm146 = vweird.f32 %v140
  %vm147 = vweird.f32 %v141
  %vm148 = vmor %vm146, %vm147
  %v149 = vsel %vm148, %v141, %v145
  %v150 = vand.u32 2147483647, %v140
  %vm151 = vcmp.eq.f32.partialorder %v150, 8.507059e+37
  %v152 = vand.u32 %v140, 2147483648
  %v153 = vor.u32 1.1754944e-38, %v152
  %v154 = vsel %vm151, %v153, %v149
  %v155 = vmul.f32 1.0, %v154
  %v156 = vadd.f32 %v74, %v114
  %v157 = vxor.u32 %v156, 2147483648
  %v158 = vmul.f32 %v157, 1.442695
  %v159 = vpow.pop %v158
  %v160 = vadd.f32 %v159, 1.0
  %v161 = vrcp.pop %v160
  %v162 = vmul.f32 %v160, %v161
  %v163 = vsub.f32 1.0, %v162
  %v164 = vmul.f32 %v161, %v163
  %v165 = vadd.f32 %v161, %v164
  %vm166 = vweird.f32 %v160
  %vm167 = vweird.f32 %v161
  %vm168 = vmor %vm166, %vm167
  %v169 = vsel %vm168, %v161, %v165
  %v170 = vand.u32 2147483647, %v160
  %vm171 = vcmp.eq.f32.partialorder %v170, 8.507059e+37
  %v172 = vand.u32 %v160, 2147483648
  %v173 = vor.u32 1.1754944e-38, %v172
  %v174 = vsel %vm171, %v173, %v169
  %v175 = vmul.f32 1.0, %v174
  %v177 = vperm.slane %v71, 0
  %v179 = vadd.f32 %v134, %v177
  %v180 = vmul.f32 %v155, %v179
  %v181 = vadd.f32 %v75, %v180
  %v182 = vtanh.pop %v181
  %v183 = vsub.f32 %v72, %v182
  %v184 = vmul.f32 %v175, %v183
  %v185 = vadd.f32 %v182, %v184
  %186 = vst [vmem:[%s4] sm:$0xff] %v185
  %s187 = scalar_lea.vmem %s0, 24
  %v188 = vld [vmem:[%s187] sm:$0xff]
  %v189 = vld [vmem:[%s187 + $0x8] sm:$0xff]
  %v190 = vld [vmem:[%s187 + $0x10] sm:$0xff]
  %191 = vmatpush.msra.mxu0 %v68
  %192 = vmatpush.msra.mxu0 %v65
  %193 = vmatpush.msra.mxu0 %v62
  %194 = vmatpush.msra.mxu0 %v59
  %195 = vmatpush.msra.mxu0 %v56
  %196 = vmatpush.msra.mxu0 %v53
  %197 = vmatpush.msra.mxu0 %v50
  %198 = vmatpush.msra.mxu0 %v47
  %199 = vmatpush.msra.mxu0 %v44
  %200 = vmatpush.msra.mxu0 %v41
  %201 = vmatpush.msra.mxu0 %v38
  %202 = vmatpush.msra.mxu0 %v35
  %203 = vmatpush.msra.mxu0 %v32
  %204 = vmatpush.msra.mxu0 %v29
  %205 = vmatpush.msra.mxu0 %v26
  %206 = vmatpush.msra.mxu0 %v23
  %207 = vmatmul.f32.gmra.mxu0 %v185
  %v208 = vpop.f32.mrf.mxu0
  %v209 = vadd.f32 0.0, %v208
  %210 = vdwg.mxu0
  %211 = vmatpush.msra.mxu0 %v69
  %212 = vmatpush.msra.mxu0 %v66
  %213 = vmatpush.msra.mxu0 %v63
  %214 = vmatpush.msra.mxu0 %v60
  %215 = vmatpush.msra.mxu0 %v57
  %216 = vmatpush.msra.mxu0 %v54
  %217 = vmatpush.msra.mxu0 %v51
  %218 = vmatpush.msra.mxu0 %v48
  %219 = vmatpush.msra.mxu0 %v45
  %220 = vmatpush.msra.mxu0 %v42
  %221 = vmatpush.msra.mxu0 %v39
  %222 = vmatpush.msra.mxu0 %v36
  %223 = vmatpush.msra.mxu0 %v33
  %224 = vmatpush.msra.mxu0 %v30
  %225 = vmatpush.msra.mxu0 %v27
  %226 = vmatpush.msra.mxu0 %v24
  %227 = vmatmul.f32.gmra.mxu0 %v185
  %v228 = vpop.f32.mrf.mxu0
  %v229 = vadd.f32 0.0, %v228
  %230 = vdwg.mxu0
  %231 = vmatpush.msra.mxu0 %v70
  %232 = vmatpush.msra.mxu0 %v67
  %233 = vmatpush.msra.mxu0 %v64
  %234 = vmatpush.msra.mxu0 %v61
  %235 = vmatpush.msra.mxu0 %v58
  %236 = vmatpush.msra.mxu0 %v55
  %237 = vmatpush.msra.mxu0 %v52
  %238 = vmatpush.msra.mxu0 %v49
  %239 = vmatpush.msra.mxu0 %v46
  %240 = vmatpush.msra.mxu0 %v43
  %241 = vmatpush.msra.mxu0 %v40
  %242 = vmatpush.msra.mxu0 %v37
  %243 = vmatpush.msra.mxu0 %v34
  %244 = vmatpush.msra.mxu0 %v31
  %245 = vmatpush.msra.mxu0 %v28
  %246 = vmatpush.msra.mxu0 %v25
  %247 = vmatmul.f32.gmra.mxu0 %v185
  %v248 = vpop.f32.mrf.mxu0
  %v249 = vadd.f32 0.0, %v248
  %250 = vdwg.mxu0
  %v251 = vadd.f32 %v188, %v209
  %v252 = vxor.u32 %v251, 2147483648
  %v253 = vmul.f32 %v252, 1.442695
  %v254 = vpow.pop %v253
  %v255 = vadd.f32 %v254, 1.0
  %v256 = vrcp.pop %v255
  %v257 = vmul.f32 %v255, %v256
  %v258 = vsub.f32 1.0, %v257
  %v259 = vmul.f32 %v256, %v258
  %v260 = vadd.f32 %v256, %v259
  %vm261 = vweird.f32 %v255
  %vm262 = vweird.f32 %v256
  %vm263 = vmor %vm261, %vm262
  %v264 = vsel %vm263, %v256, %v260
  %v265 = vand.u32 2147483647, %v255
  %vm266 = vcmp.eq.f32.partialorder %v265, 8.507059e+37
  %v267 = vand.u32 %v255, 2147483648
  %v268 = vor.u32 1.1754944e-38, %v267
  %v269 = vsel %vm266, %v268, %v264
  %v270 = vmul.f32 1.0, %v269
  %v271 = vadd.f32 %v189, %v229
  %v272 = vxor.u32 %v271, 2147483648
  %v273 = vmul.f32 %v272, 1.442695
  %v274 = vpow.pop %v273
  %v275 = vadd.f32 %v274, 1.0
  %v276 = vrcp.pop %v275
  %v277 = vmul.f32 %v275, %v276
  %v278 = vsub.f32 1.0, %v277
  %v279 = vmul.f32 %v276, %v278
  %v280 = vadd.f32 %v276, %v279
  %vm281 = vweird.f32 %v275
  %vm282 = vweird.f32 %v276
  %vm283 = vmor %vm281, %vm282
  %v284 = vsel %vm283, %v276, %v280
  %v285 = vand.u32 2147483647, %v275
  %vm286 = vcmp.eq.f32.partialorder %v285, 8.507059e+37
  %v287 = vand.u32 %v275, 2147483648
  %v288 = vor.u32 1.1754944e-38, %v287
  %v289 = vsel %vm286, %v288, %v284
  %v290 = vmul.f32 1.0, %v289
  %v291 = vadd.f32 %v249, %v177
  %v292 = vmul.f32 %v270, %v291
  %v293 = vadd.f32 %v190, %v292
  %v294 = vtanh.pop %v293
  %v295 = vsub.f32 %v185, %v294
  %v296 = vmul.f32 %v290, %v295
  %v297 = vadd.f32 %v294, %v296
  %s298 = scalar_lea.vmem %s4, 8
  %299 = vst [vmem:[%s298] sm:$0xff] %v297
  %s300 = scalar_lea.vmem %s0, 48
  %v301 = vld [vmem:[%s300] sm:$0xff]
  %v302 = vld [vmem:[%s300 + $0x8] sm:$0xff]
  %v303 = vld [vmem:[%s300 + $0x10] sm:$0xff]
  %304 = vmatpush.msra.mxu0 %v68
  %305 = vmatpush.msra.mxu0 %v65
  %306 = vmatpush.msra.mxu0 %v62
  %307 = vmatpush.msra.mxu0 %v59
  %308 = vmatpush.msra.mxu0 %v56
  %309 = vmatpush.msra.mxu0 %v53
  %310 = vmatpush.msra.mxu0 %v50
  %311 = vmatpush.msra.mxu0 %v47
  %312 = vmatpush.msra.mxu0 %v44
  %313 = vmatpush.msra.mxu0 %v41
  %314 = vmatpush.msra.mxu0 %v38
  %315 = vmatpush.msra.mxu0 %v35
  %316 = vmatpush.msra.mxu0 %v32
  %317 = vmatpush.msra.mxu0 %v29
  %318 = vmatpush.msra.mxu0 %v26
  %319 = vmatpush.msra.mxu0 %v23
  %320 = vmatmul.f32.gmra.mxu0 %v297
  %v321 = vpop.f32.mrf.mxu0
  %v322 = vadd.f32 0.0, %v321
  %323 = vdwg.mxu0
  %324 = vmatpush.msra.mxu0 %v69
  %325 = vmatpush.msra.mxu0 %v66
  %326 = vmatpush.msra.mxu0 %v63
  %327 = vmatpush.msra.mxu0 %v60
  %328 = vmatpush.msra.mxu0 %v57
  %329 = vmatpush.msra.mxu0 %v54
  %330 = vmatpush.msra.mxu0 %v51
  %331 = vmatpush.msra.mxu0 %v48
  %332 = vmatpush.msra.mxu0 %v45
  %333 = vmatpush.msra.mxu0 %v42
  %334 = vmatpush.msra.mxu0 %v39
  %335 = vmatpush.msra.mxu0 %v36
  %336 = vmatpush.msra.mxu0 %v33
  %337 = vmatpush.msra.mxu0 %v30
  %338 = vmatpush.msra.mxu0 %v27
  %339 = vmatpush.msra.mxu0 %v24
  %340 = vmatmul.f32.gmra.mxu0 %v297
  %v341 = vpop.f32.mrf.mxu0
  %v342 = vadd.f32 0.0, %v341
  %343 = vdwg.mxu0
  %344 = vmatpush.msra.mxu0 %v70
  %345 = vmatpush.msra.mxu0 %v67
  %346 = vmatpush.msra.mxu0 %v64
  %347 = vmatpush.msra.mxu0 %v61
  %348 = vmatpush.msra.mxu0 %v58
  %349 = vmatpush.msra.mxu0 %v55
  %350 = vmatpush.msra.mxu0 %v52
  %351 = vmatpush.msra.mxu0 %v49
  %352 = vmatpush.msra.mxu0 %v46
  %353 = vmatpush.msra.mxu0 %v43
  %354 = vmatpush.msra.mxu0 %v40
  %355 = vmatpush.msra.mxu0 %v37
  %356 = vmatpush.msra.mxu0 %v34
  %357 = vmatpush.msra.mxu0 %v31
  %358 = vmatpush.msra.mxu0 %v28
  %359 = vmatpush.msra.mxu0 %v25
  %360 = vmatmul.f32.gmra.mxu0 %v297
  %v361 = vpop.f32.mrf.mxu0
  %v362 = vadd.f32 0.0, %v361
  %363 = vdwg.mxu0
  %v364 = vadd.f32 %v301, %v322
  %v365 = vxor.u32 %v364, 2147483648
  %v366 = vmul.f32 %v365, 1.442695
  %v367 = vpow.pop %v366
  %v368 = vadd.f32 %v367, 1.0
  %v369 = vrcp.pop %v368
  %v370 = vmul.f32 %v368, %v369
  %v371 = vsub.f32 1.0, %v370
  %v372 = vmul.f32 %v369, %v371
  %v373 = vadd.f32 %v369, %v372
  %vm374 = vweird.f32 %v368
  %vm375 = vweird.f32 %v369
  %vm376 = vmor %vm374, %vm375
  %v377 = vsel %vm376, %v369, %v373
  %v378 = vand.u32 2147483647, %v368
  %vm379 = vcmp.eq.f32.partialorder %v378, 8.507059e+37
  %v380 = vand.u32 %v368, 2147483648
  %v381 = vor.u32 1.1754944e-38, %v380
  %v382 = vsel %vm379, %v381, %v377
  %v383 = vmul.f32 1.0, %v382
  %v384 = vadd.f32 %v302, %v342
  %v385 = vxor.u32 %v384, 2147483648
  %v386 = vmul.f32 %v385, 1.442695
  %v387 = vpow.pop %v386
  %v388 = vadd.f32 %v387, 1.0
  %v389 = vrcp.pop %v388
  %v390 = vmul.f32 %v388, %v389
  %v391 = vsub.f32 1.0, %v390
  %v392 = vmul.f32 %v389, %v391
  %v393 = vadd.f32 %v389, %v392
  %vm394 = vweird.f32 %v388
  %vm395 = vweird.f32 %v389
  %vm396 = vmor %vm394, %vm395
  %v397 = vsel %vm396, %v389, %v393
  %v398 = vand.u32 2147483647, %v388
  %vm399 = vcmp.eq.f32.partialorder %v398, 8.507059e+37
  %v400 = vand.u32 %v388, 2147483648
  %v401 = vor.u32 1.1754944e-38, %v400
  %v402 = vsel %vm399, %v401, %v397
  %v403 = vmul.f32 1.0, %v402
  %v404 = vadd.f32 %v362, %v177
  %v405 = vmul.f32 %v383, %v404
  %v406 = vadd.f32 %v303, %v405
  %v407 = vtanh.pop %v406
  %v408 = vsub.f32 %v297, %v407
  %v409 = vmul.f32 %v403, %v408
  %v410 = vadd.f32 %v407, %v409
  %s411 = scalar_lea.vmem %s4, 16
  %412 = vst [vmem:[%s411] sm:$0xff] %v410
  %s413 = scalar_lea.vmem %s0, 72
  %v414 = vld [vmem:[%s413] sm:$0xff]
  %v415 = vld [vmem:[%s413 + $0x8] sm:$0xff]
  %v416 = vld [vmem:[%s413 + $0x10] sm:$0xff]
  %417 = vmatpush.msra.mxu0 %v68
  %418 = vmatpush.msra.mxu0 %v65
  %419 = vmatpush.msra.mxu0 %v62
  %420 = vmatpush.msra.mxu0 %v59
  %421 = vmatpush.msra.mxu0 %v56
  %422 = vmatpush.msra.mxu0 %v53
  %423 = vmatpush.msra.mxu0 %v50
  %424 = vmatpush.msra.mxu0 %v47
  %425 = vmatpush.msra.mxu0 %v44
  %426 = vmatpush.msra.mxu0 %v41
  %427 = vmatpush.msra.mxu0 %v38
  %428 = vmatpush.msra.mxu0 %v35
  %429 = vmatpush.msra.mxu0 %v32
  %430 = vmatpush.msra.mxu0 %v29
  %431 = vmatpush.msra.mxu0 %v26
  %432 = vmatpush.msra.mxu0 %v23
  %433 = vmatmul.f32.gmra.mxu0 %v410
  %v434 = vpop.f32.mrf.mxu0
  %v435 = vadd.f32 0.0, %v434
  %436 = vdwg.mxu0
  %437 = vmatpush.msra.mxu0 %v69
  %438 = vmatpush.msra.mxu0 %v66
  %439 = vmatpush.msra.mxu0 %v63
  %440 = vmatpush.msra.mxu0 %v60
  %441 = vmatpush.msra.mxu0 %v57
  %442 = vmatpush.msra.mxu0 %v54
  %443 = vmatpush.msra.mxu0 %v51
  %444 = vmatpush.msra.mxu0 %v48
  %445 = vmatpush.msra.mxu0 %v45
  %446 = vmatpush.msra.mxu0 %v42
  %447 = vmatpush.msra.mxu0 %v39
  %448 = vmatpush.msra.mxu0 %v36
  %449 = vmatpush.msra.mxu0 %v33
  %450 = vmatpush.msra.mxu0 %v30
  %451 = vmatpush.msra.mxu0 %v27
  %452 = vmatpush.msra.mxu0 %v24
  %453 = vmatmul.f32.gmra.mxu0 %v410
  %v454 = vpop.f32.mrf.mxu0
  %v455 = vadd.f32 0.0, %v454
  %456 = vdwg.mxu0
  %457 = vmatpush.msra.mxu0 %v70
  %458 = vmatpush.msra.mxu0 %v67
  %459 = vmatpush.msra.mxu0 %v64
  %460 = vmatpush.msra.mxu0 %v61
  %461 = vmatpush.msra.mxu0 %v58
  %462 = vmatpush.msra.mxu0 %v55
  %463 = vmatpush.msra.mxu0 %v52
  %464 = vmatpush.msra.mxu0 %v49
  %465 = vmatpush.msra.mxu0 %v46
  %466 = vmatpush.msra.mxu0 %v43
  %467 = vmatpush.msra.mxu0 %v40
  %468 = vmatpush.msra.mxu0 %v37
  %469 = vmatpush.msra.mxu0 %v34
  %470 = vmatpush.msra.mxu0 %v31
  %471 = vmatpush.msra.mxu0 %v28
  %472 = vmatpush.msra.mxu0 %v25
  %473 = vmatmul.f32.gmra.mxu0 %v410
  %v474 = vpop.f32.mrf.mxu0
  %v475 = vadd.f32 0.0, %v474
  %476 = vdwg.mxu0
  %v477 = vadd.f32 %v414, %v435
  %v478 = vxor.u32 %v477, 2147483648
  %v479 = vmul.f32 %v478, 1.442695
  %v480 = vpow.pop %v479
  %v481 = vadd.f32 %v480, 1.0
  %v482 = vrcp.pop %v481
  %v483 = vmul.f32 %v481, %v482
  %v484 = vsub.f32 1.0, %v483
  %v485 = vmul.f32 %v482, %v484
  %v486 = vadd.f32 %v482, %v485
  %vm487 = vweird.f32 %v481
  %vm488 = vweird.f32 %v482
  %vm489 = vmor %vm487, %vm488
  %v490 = vsel %vm489, %v482, %v486
  %v491 = vand.u32 2147483647, %v481
  %vm492 = vcmp.eq.f32.partialorder %v491, 8.507059e+37
  %v493 = vand.u32 %v481, 2147483648
  %v494 = vor.u32 1.1754944e-38, %v493
  %v495 = vsel %vm492, %v494, %v490
  %v496 = vmul.f32 1.0, %v495
  %v497 = vadd.f32 %v415, %v455
  %v498 = vxor.u32 %v497, 2147483648
  %v499 = vmul.f32 %v498, 1.442695
  %v500 = vpow.pop %v499
  %v501 = vadd.f32 %v500, 1.0
  %v502 = vrcp.pop %v501
  %v503 = vmul.f32 %v501, %v502
  %v504 = vsub.f32 1.0, %v503
  %v505 = vmul.f32 %v502, %v504
  %v506 = vadd.f32 %v502, %v505
  %vm507 = vweird.f32 %v501
  %vm508 = vweird.f32 %v502
  %vm509 = vmor %vm507, %vm508
  %v510 = vsel %vm509, %v502, %v506
  %v511 = vand.u32 2147483647, %v501
  %vm512 = vcmp.eq.f32.partialorder %v511, 8.507059e+37
  %v513 = vand.u32 %v501, 2147483648
  %v514 = vor.u32 1.1754944e-38, %v513
  %v515 = vsel %vm512, %v514, %v510
  %v516 = vmul.f32 1.0, %v515
  %v517 = vadd.f32 %v475, %v177
  %v518 = vmul.f32 %v496, %v517
  %v519 = vadd.f32 %v416, %v518
  %v520 = vtanh.pop %v519
  %v521 = vsub.f32 %v410, %v520
  %v522 = vmul.f32 %v516, %v521
  %v523 = vadd.f32 %v520, %v522
  %s524 = scalar_lea.vmem %s4, 24
  %525 = vst [vmem:[%s524] sm:$0xff] %v523
  %s526 = scalar_lea.vmem %s0, 96
  %v527 = vld [vmem:[%s526] sm:$0xff]
  %v528 = vld [vmem:[%s526 + $0x8] sm:$0xff]
  %v529 = vld [vmem:[%s526 + $0x10] sm:$0xff]
  %530 = vmatpush.msra.mxu0 %v68
  %531 = vmatpush.msra.mxu0 %v65
  %532 = vmatpush.msra.mxu0 %v62
  %533 = vmatpush.msra.mxu0 %v59
  %534 = vmatpush.msra.mxu0 %v56
  %535 = vmatpush.msra.mxu0 %v53
  %536 = vmatpush.msra.mxu0 %v50
  %537 = vmatpush.msra.mxu0 %v47
  %538 = vmatpush.msra.mxu0 %v44
  %539 = vmatpush.msra.mxu0 %v41
  %540 = vmatpush.msra.mxu0 %v38
  %541 = vmatpush.msra.mxu0 %v35
  %542 = vmatpush.msra.mxu0 %v32
  %543 = vmatpush.msra.mxu0 %v29
  %544 = vmatpush.msra.mxu0 %v26
  %545 = vmatpush.msra.mxu0 %v23
  %546 = vmatmul.f32.gmra.mxu0 %v523
  %v547 = vpop.f32.mrf.mxu0
  %v548 = vadd.f32 0.0, %v547
  %549 = vdwg.mxu0
  %550 = vmatpush.msra.mxu0 %v69
  %551 = vmatpush.msra.mxu0 %v66
  %552 = vmatpush.msra.mxu0 %v63
  %553 = vmatpush.msra.mxu0 %v60
  %554 = vmatpush.msra.mxu0 %v57
  %555 = vmatpush.msra.mxu0 %v54
  %556 = vmatpush.msra.mxu0 %v51
  %557 = vmatpush.msra.mxu0 %v48
  %558 = vmatpush.msra.mxu0 %v45
  %559 = vmatpush.msra.mxu0 %v42
  %560 = vmatpush.msra.mxu0 %v39
  %561 = vmatpush.msra.mxu0 %v36
  %562 = vmatpush.msra.mxu0 %v33
  %563 = vmatpush.msra.mxu0 %v30
  %564 = vmatpush.msra.mxu0 %v27
  %565 = vmatpush.msra.mxu0 %v24
  %566 = vmatmul.f32.gmra.mxu0 %v523
  %v567 = vpop.f32.mrf.mxu0
  %v568 = vadd.f32 0.0, %v567
  %569 = vdwg.mxu0
  %570 = vmatpush.msra.mxu0 %v70
  %571 = vmatpush.msra.mxu0 %v67
  %572 = vmatpush.msra.mxu0 %v64
  %573 = vmatpush.msra.mxu0 %v61
  %574 = vmatpush.msra.mxu0 %v58
  %575 = vmatpush.msra.mxu0 %v55
  %576 = vmatpush.msra.mxu0 %v52
  %577 = vmatpush.msra.mxu0 %v49
  %578 = vmatpush.msra.mxu0 %v46
  %579 = vmatpush.msra.mxu0 %v43
  %580 = vmatpush.msra.mxu0 %v40
  %581 = vmatpush.msra.mxu0 %v37
  %582 = vmatpush.msra.mxu0 %v34
  %583 = vmatpush.msra.mxu0 %v31
  %584 = vmatpush.msra.mxu0 %v28
  %585 = vmatpush.msra.mxu0 %v25
  %586 = vmatmul.f32.gmra.mxu0 %v523
  %v587 = vpop.f32.mrf.mxu0
  %v588 = vadd.f32 0.0, %v587
  %589 = vdwg.mxu0
  %v590 = vadd.f32 %v527, %v548
  %v591 = vxor.u32 %v590, 2147483648
  %v592 = vmul.f32 %v591, 1.442695
  %v593 = vpow.pop %v592
  %v594 = vadd.f32 %v593, 1.0
  %v595 = vrcp.pop %v594
  %v596 = vmul.f32 %v594, %v595
  %v597 = vsub.f32 1.0, %v596
  %v598 = vmul.f32 %v595, %v597
  %v599 = vadd.f32 %v595, %v598
  %vm600 = vweird.f32 %v594
  %vm601 = vweird.f32 %v595
  %vm602 = vmor %vm600, %vm601
  %v603 = vsel %vm602, %v595, %v599
  %v604 = vand.u32 2147483647, %v594
  %vm605 = vcmp.eq.f32.partialorder %v604, 8.507059e+37
  %v606 = vand.u32 %v594, 2147483648
  %v607 = vor.u32 1.1754944e-38, %v606
  %v608 = vsel %vm605, %v607, %v603
  %v609 = vmul.f32 1.0, %v608
  %v610 = vadd.f32 %v528, %v568
  %v611 = vxor.u32 %v610, 2147483648
  %v612 = vmul.f32 %v611, 1.442695
  %v613 = vpow.pop %v612
  %v614 = vadd.f32 %v613, 1.0
  %v615 = vrcp.pop %v614
  %v616 = vmul.f32 %v614, %v615
  %v617 = vsub.f32 1.0, %v616
  %v618 = vmul.f32 %v615, %v617
  %v619 = vadd.f32 %v615, %v618
  %vm620 = vweird.f32 %v614
  %vm621 = vweird.f32 %v615
  %vm622 = vmor %vm620, %vm621
  %v623 = vsel %vm622, %v615, %v619
  %v624 = vand.u32 2147483647, %v614
  %vm625 = vcmp.eq.f32.partialorder %v624, 8.507059e+37
  %v626 = vand.u32 %v614, 2147483648
  %v627 = vor.u32 1.1754944e-38, %v626
  %v628 = vsel %vm625, %v627, %v623
  %v629 = vmul.f32 1.0, %v628
  %v630 = vadd.f32 %v588, %v177
  %v631 = vmul.f32 %v609, %v630
  %v632 = vadd.f32 %v529, %v631
  %v633 = vtanh.pop %v632
  %v634 = vsub.f32 %v523, %v633
  %v635 = vmul.f32 %v629, %v634
  %v636 = vadd.f32 %v633, %v635
  %s637 = scalar_lea.vmem %s4, 32
  %638 = vst [vmem:[%s637] sm:$0xff] %v636
  %s639 = scalar_lea.vmem %s0, 120
  %v640 = vld [vmem:[%s639] sm:$0xff]
  %v641 = vld [vmem:[%s639 + $0x8] sm:$0xff]
  %v642 = vld [vmem:[%s639 + $0x10] sm:$0xff]
  %643 = vmatpush.msra.mxu0 %v68
  %644 = vmatpush.msra.mxu0 %v65
  %645 = vmatpush.msra.mxu0 %v62
  %646 = vmatpush.msra.mxu0 %v59
  %647 = vmatpush.msra.mxu0 %v56
  %648 = vmatpush.msra.mxu0 %v53
  %649 = vmatpush.msra.mxu0 %v50
  %650 = vmatpush.msra.mxu0 %v47
  %651 = vmatpush.msra.mxu0 %v44
  %652 = vmatpush.msra.mxu0 %v41
  %653 = vmatpush.msra.mxu0 %v38
  %654 = vmatpush.msra.mxu0 %v35
  %655 = vmatpush.msra.mxu0 %v32
  %656 = vmatpush.msra.mxu0 %v29
  %657 = vmatpush.msra.mxu0 %v26
  %658 = vmatpush.msra.mxu0 %v23
  %659 = vmatmul.f32.gmra.mxu0 %v636
  %v660 = vpop.f32.mrf.mxu0
  %v661 = vadd.f32 0.0, %v660
  %662 = vdwg.mxu0
  %663 = vmatpush.msra.mxu0 %v69
  %664 = vmatpush.msra.mxu0 %v66
  %665 = vmatpush.msra.mxu0 %v63
  %666 = vmatpush.msra.mxu0 %v60
  %667 = vmatpush.msra.mxu0 %v57
  %668 = vmatpush.msra.mxu0 %v54
  %669 = vmatpush.msra.mxu0 %v51
  %670 = vmatpush.msra.mxu0 %v48
  %671 = vmatpush.msra.mxu0 %v45
  %672 = vmatpush.msra.mxu0 %v42
  %673 = vmatpush.msra.mxu0 %v39
  %674 = vmatpush.msra.mxu0 %v36
  %675 = vmatpush.msra.mxu0 %v33
  %676 = vmatpush.msra.mxu0 %v30
  %677 = vmatpush.msra.mxu0 %v27
  %678 = vmatpush.msra.mxu0 %v24
  %679 = vmatmul.f32.gmra.mxu0 %v636
  %v680 = vpop.f32.mrf.mxu0
  %v681 = vadd.f32 0.0, %v680
  %682 = vdwg.mxu0
  %683 = vmatpush.msra.mxu0 %v70
  %684 = vmatpush.msra.mxu0 %v67
  %685 = vmatpush.msra.mxu0 %v64
  %686 = vmatpush.msra.mxu0 %v61
  %687 = vmatpush.msra.mxu0 %v58
  %688 = vmatpush.msra.mxu0 %v55
  %689 = vmatpush.msra.mxu0 %v52
  %690 = vmatpush.msra.mxu0 %v49
  %691 = vmatpush.msra.mxu0 %v46
  %692 = vmatpush.msra.mxu0 %v43
  %693 = vmatpush.msra.mxu0 %v40
  %694 = vmatpush.msra.mxu0 %v37
  %695 = vmatpush.msra.mxu0 %v34
  %696 = vmatpush.msra.mxu0 %v31
  %697 = vmatpush.msra.mxu0 %v28
  %698 = vmatpush.msra.mxu0 %v25
  %699 = vmatmul.f32.gmra.mxu0 %v636
  %v700 = vpop.f32.mrf.mxu0
  %v701 = vadd.f32 0.0, %v700
  %702 = vdwg.mxu0
  %v703 = vadd.f32 %v640, %v661
  %v704 = vxor.u32 %v703, 2147483648
  %v705 = vmul.f32 %v704, 1.442695
  %v706 = vpow.pop %v705
  %v707 = vadd.f32 %v706, 1.0
  %v708 = vrcp.pop %v707
  %v709 = vmul.f32 %v707, %v708
  %v710 = vsub.f32 1.0, %v709
  %v711 = vmul.f32 %v708, %v710
  %v712 = vadd.f32 %v708, %v711
  %vm713 = vweird.f32 %v707
  %vm714 = vweird.f32 %v708
  %vm715 = vmor %vm713, %vm714
  %v716 = vsel %vm715, %v708, %v712
  %v717 = vand.u32 2147483647, %v707
  %vm718 = vcmp.eq.f32.partialorder %v717, 8.507059e+37
  %v719 = vand.u32 %v707, 2147483648
  %v720 = vor.u32 1.1754944e-38, %v719
  %v721 = vsel %vm718, %v720, %v716
  %v722 = vmul.f32 1.0, %v721
  %v723 = vadd.f32 %v641, %v681
  %v724 = vxor.u32 %v723, 2147483648
  %v725 = vmul.f32 %v724, 1.442695
  %v726 = vpow.pop %v725
  %v727 = vadd.f32 %v726, 1.0
  %v728 = vrcp.pop %v727
  %v729 = vmul.f32 %v727, %v728
  %v730 = vsub.f32 1.0, %v729
  %v731 = vmul.f32 %v728, %v730
  %v732 = vadd.f32 %v728, %v731
  %vm733 = vweird.f32 %v727
  %vm734 = vweird.f32 %v728
  %vm735 = vmor %vm733, %vm734
  %v736 = vsel %vm735, %v728, %v732
  %v737 = vand.u32 2147483647, %v727
  %vm738 = vcmp.eq.f32.partialorder %v737, 8.507059e+37
  %v739 = vand.u32 %v727, 2147483648
  %v740 = vor.u32 1.1754944e-38, %v739
  %v741 = vsel %vm738, %v740, %v736
  %v742 = vmul.f32 1.0, %v741
  %v743 = vadd.f32 %v701, %v177
  %v744 = vmul.f32 %v722, %v743
  %v745 = vadd.f32 %v642, %v744
  %v746 = vtanh.pop %v745
  %v747 = vsub.f32 %v636, %v746
  %v748 = vmul.f32 %v742, %v747
  %v749 = vadd.f32 %v746, %v748
  %s750 = scalar_lea.vmem %s4, 40
  %751 = vst [vmem:[%s750] sm:$0xff] %v749
  %s752 = scalar_lea.vmem %s0, 144
  %v753 = vld [vmem:[%s752] sm:$0xff]
  %v754 = vld [vmem:[%s752 + $0x8] sm:$0xff]
  %v755 = vld [vmem:[%s752 + $0x10] sm:$0xff]
  %756 = vmatpush.msra.mxu0 %v68
  %757 = vmatpush.msra.mxu0 %v65
  %758 = vmatpush.msra.mxu0 %v62
  %759 = vmatpush.msra.mxu0 %v59
  %760 = vmatpush.msra.mxu0 %v56
  %761 = vmatpush.msra.mxu0 %v53
  %762 = vmatpush.msra.mxu0 %v50
  %763 = vmatpush.msra.mxu0 %v47
  %764 = vmatpush.msra.mxu0 %v44
  %765 = vmatpush.msra.mxu0 %v41
  %766 = vmatpush.msra.mxu0 %v38
  %767 = vmatpush.msra.mxu0 %v35
  %768 = vmatpush.msra.mxu0 %v32
  %769 = vmatpush.msra.mxu0 %v29
  %770 = vmatpush.msra.mxu0 %v26
  %771 = vmatpush.msra.mxu0 %v23
  %772 = vmatmul.f32.gmra.mxu0 %v749
  %v773 = vpop.f32.mrf.mxu0
  %v774 = vadd.f32 0.0, %v773
  %775 = vdwg.mxu0
  %776 = vmatpush.msra.mxu0 %v69
  %777 = vmatpush.msra.mxu0 %v66
  %778 = vmatpush.msra.mxu0 %v63
  %779 = vmatpush.msra.mxu0 %v60
  %780 = vmatpush.msra.mxu0 %v57
  %781 = vmatpush.msra.mxu0 %v54
  %782 = vmatpush.msra.mxu0 %v51
  %783 = vmatpush.msra.mxu0 %v48
  %784 = vmatpush.msra.mxu0 %v45
  %785 = vmatpush.msra.mxu0 %v42
  %786 = vmatpush.msra.mxu0 %v39
  %787 = vmatpush.msra.mxu0 %v36
  %788 = vmatpush.msra.mxu0 %v33
  %789 = vmatpush.msra.mxu0 %v30
  %790 = vmatpush.msra.mxu0 %v27
  %791 = vmatpush.msra.mxu0 %v24
  %792 = vmatmul.f32.gmra.mxu0 %v749
  %v793 = vpop.f32.mrf.mxu0
  %v794 = vadd.f32 0.0, %v793
  %795 = vdwg.mxu0
  %796 = vmatpush.msra.mxu0 %v70
  %797 = vmatpush.msra.mxu0 %v67
  %798 = vmatpush.msra.mxu0 %v64
  %799 = vmatpush.msra.mxu0 %v61
  %800 = vmatpush.msra.mxu0 %v58
  %801 = vmatpush.msra.mxu0 %v55
  %802 = vmatpush.msra.mxu0 %v52
  %803 = vmatpush.msra.mxu0 %v49
  %804 = vmatpush.msra.mxu0 %v46
  %805 = vmatpush.msra.mxu0 %v43
  %806 = vmatpush.msra.mxu0 %v40
  %807 = vmatpush.msra.mxu0 %v37
  %808 = vmatpush.msra.mxu0 %v34
  %809 = vmatpush.msra.mxu0 %v31
  %810 = vmatpush.msra.mxu0 %v28
  %811 = vmatpush.msra.mxu0 %v25
  %812 = vmatmul.f32.gmra.mxu0 %v749
  %v813 = vpop.f32.mrf.mxu0
  %v814 = vadd.f32 0.0, %v813
  %815 = vdwg.mxu0
  %v816 = vadd.f32 %v753, %v774
  %v817 = vxor.u32 %v816, 2147483648
  %v818 = vmul.f32 %v817, 1.442695
  %v819 = vpow.pop %v818
  %v820 = vadd.f32 %v819, 1.0
  %v821 = vrcp.pop %v820
  %v822 = vmul.f32 %v820, %v821
  %v823 = vsub.f32 1.0, %v822
  %v824 = vmul.f32 %v821, %v823
  %v825 = vadd.f32 %v821, %v824
  %vm826 = vweird.f32 %v820
  %vm827 = vweird.f32 %v821
  %vm828 = vmor %vm826, %vm827
  %v829 = vsel %vm828, %v821, %v825
  %v830 = vand.u32 2147483647, %v820
  %vm831 = vcmp.eq.f32.partialorder %v830, 8.507059e+37
  %v832 = vand.u32 %v820, 2147483648
  %v833 = vor.u32 1.1754944e-38, %v832
  %v834 = vsel %vm831, %v833, %v829
  %v835 = vmul.f32 1.0, %v834
  %v836 = vadd.f32 %v754, %v794
  %v837 = vxor.u32 %v836, 2147483648
  %v838 = vmul.f32 %v837, 1.442695
  %v839 = vpow.pop %v838
  %v840 = vadd.f32 %v839, 1.0
  %v841 = vrcp.pop %v840
  %v842 = vmul.f32 %v840, %v841
  %v843 = vsub.f32 1.0, %v842
  %v844 = vmul.f32 %v841, %v843
  %v845 = vadd.f32 %v841, %v844
  %vm846 = vweird.f32 %v840
  %vm847 = vweird.f32 %v841
  %vm848 = vmor %vm846, %vm847
  %v849 = vsel %vm848, %v841, %v845
  %v850 = vand.u32 2147483647, %v840
  %vm851 = vcmp.eq.f32.partialorder %v850, 8.507059e+37
  %v852 = vand.u32 %v840, 2147483648
  %v853 = vor.u32 1.1754944e-38, %v852
  %v854 = vsel %vm851, %v853, %v849
  %v855 = vmul.f32 1.0, %v854
  %v856 = vadd.f32 %v814, %v177
  %v857 = vmul.f32 %v835, %v856
  %v858 = vadd.f32 %v755, %v857
  %v859 = vtanh.pop %v858
  %v860 = vsub.f32 %v749, %v859
  %v861 = vmul.f32 %v855, %v860
  %v862 = vadd.f32 %v859, %v861
  %s863 = scalar_lea.vmem %s4, 48
  %864 = vst [vmem:[%s863] sm:$0xff] %v862
  %s865 = scalar_lea.vmem %s0, 168
  %v866 = vld [vmem:[%s865] sm:$0xff]
  %v867 = vld [vmem:[%s865 + $0x8] sm:$0xff]
  %v868 = vld [vmem:[%s865 + $0x10] sm:$0xff]
  %869 = vmatpush.msra.mxu0 %v68
  %870 = vmatpush.msra.mxu0 %v65
  %871 = vmatpush.msra.mxu0 %v62
  %872 = vmatpush.msra.mxu0 %v59
  %873 = vmatpush.msra.mxu0 %v56
  %874 = vmatpush.msra.mxu0 %v53
  %875 = vmatpush.msra.mxu0 %v50
  %876 = vmatpush.msra.mxu0 %v47
  %877 = vmatpush.msra.mxu0 %v44
  %878 = vmatpush.msra.mxu0 %v41
  %879 = vmatpush.msra.mxu0 %v38
  %880 = vmatpush.msra.mxu0 %v35
  %881 = vmatpush.msra.mxu0 %v32
  %882 = vmatpush.msra.mxu0 %v29
  %883 = vmatpush.msra.mxu0 %v26
  %884 = vmatpush.msra.mxu0 %v23
  %885 = vmatmul.f32.gmra.mxu0 %v862
  %v886 = vpop.f32.mrf.mxu0
  %v887 = vadd.f32 0.0, %v886
  %888 = vdwg.mxu0
  %889 = vmatpush.msra.mxu0 %v69
  %890 = vmatpush.msra.mxu0 %v66
  %891 = vmatpush.msra.mxu0 %v63
  %892 = vmatpush.msra.mxu0 %v60
  %893 = vmatpush.msra.mxu0 %v57
  %894 = vmatpush.msra.mxu0 %v54
  %895 = vmatpush.msra.mxu0 %v51
  %896 = vmatpush.msra.mxu0 %v48
  %897 = vmatpush.msra.mxu0 %v45
  %898 = vmatpush.msra.mxu0 %v42
  %899 = vmatpush.msra.mxu0 %v39
  %900 = vmatpush.msra.mxu0 %v36
  %901 = vmatpush.msra.mxu0 %v33
  %902 = vmatpush.msra.mxu0 %v30
  %903 = vmatpush.msra.mxu0 %v27
  %904 = vmatpush.msra.mxu0 %v24
  %905 = vmatmul.f32.gmra.mxu0 %v862
  %v906 = vpop.f32.mrf.mxu0
  %v907 = vadd.f32 0.0, %v906
  %908 = vdwg.mxu0
  %909 = vmatpush.msra.mxu0 %v70
  %910 = vmatpush.msra.mxu0 %v67
  %911 = vmatpush.msra.mxu0 %v64
  %912 = vmatpush.msra.mxu0 %v61
  %913 = vmatpush.msra.mxu0 %v58
  %914 = vmatpush.msra.mxu0 %v55
  %915 = vmatpush.msra.mxu0 %v52
  %916 = vmatpush.msra.mxu0 %v49
  %917 = vmatpush.msra.mxu0 %v46
  %918 = vmatpush.msra.mxu0 %v43
  %919 = vmatpush.msra.mxu0 %v40
  %920 = vmatpush.msra.mxu0 %v37
  %921 = vmatpush.msra.mxu0 %v34
  %922 = vmatpush.msra.mxu0 %v31
  %923 = vmatpush.msra.mxu0 %v28
  %924 = vmatpush.msra.mxu0 %v25
  %925 = vmatmul.f32.gmra.mxu0 %v862
  %v926 = vpop.f32.mrf.mxu0
  %v927 = vadd.f32 0.0, %v926
  %928 = vdwg.mxu0
  %v929 = vadd.f32 %v866, %v887
  %v930 = vxor.u32 %v929, 2147483648
  %v931 = vmul.f32 %v930, 1.442695
  %v932 = vpow.pop %v931
  %v933 = vadd.f32 %v932, 1.0
  %v934 = vrcp.pop %v933
  %v935 = vmul.f32 %v933, %v934
  %v936 = vsub.f32 1.0, %v935
  %v937 = vmul.f32 %v934, %v936
  %v938 = vadd.f32 %v934, %v937
  %vm939 = vweird.f32 %v933
  %vm940 = vweird.f32 %v934
  %vm941 = vmor %vm939, %vm940
  %v942 = vsel %vm941, %v934, %v938
  %v943 = vand.u32 2147483647, %v933
  %vm944 = vcmp.eq.f32.partialorder %v943, 8.507059e+37
  %v945 = vand.u32 %v933, 2147483648
  %v946 = vor.u32 1.1754944e-38, %v945
  %v947 = vsel %vm944, %v946, %v942
  %v948 = vmul.f32 1.0, %v947
  %v949 = vadd.f32 %v867, %v907
  %v950 = vxor.u32 %v949, 2147483648
  %v951 = vmul.f32 %v950, 1.442695
  %v952 = vpow.pop %v951
  %v953 = vadd.f32 %v952, 1.0
  %v954 = vrcp.pop %v953
  %v955 = vmul.f32 %v953, %v954
  %v956 = vsub.f32 1.0, %v955
  %v957 = vmul.f32 %v954, %v956
  %v958 = vadd.f32 %v954, %v957
  %vm959 = vweird.f32 %v953
  %vm960 = vweird.f32 %v954
  %vm961 = vmor %vm959, %vm960
  %v962 = vsel %vm961, %v954, %v958
  %v963 = vand.u32 2147483647, %v953
  %vm964 = vcmp.eq.f32.partialorder %v963, 8.507059e+37
  %v965 = vand.u32 %v953, 2147483648
  %v966 = vor.u32 1.1754944e-38, %v965
  %v967 = vsel %vm964, %v966, %v962
  %v968 = vmul.f32 1.0, %v967
  %v969 = vadd.f32 %v927, %v177
  %v970 = vmul.f32 %v948, %v969
  %v971 = vadd.f32 %v868, %v970
  %v972 = vtanh.pop %v971
  %v973 = vsub.f32 %v862, %v972
  %v974 = vmul.f32 %v968, %v973
  %v975 = vadd.f32 %v972, %v974
  %s976 = scalar_lea.vmem %s4, 56
  %977 = vst [vmem:[%s976] sm:$0xff] %v975
  %978 = vst [vmem:[#allocation2] sm:$0xff] %v975
  // Predicated region
  $region22: #{rnn_encoder_forward.1} parent=0 // pred_check
    _
  $region23: #{rnn_encoder_forward.1} parent=0 // pred_check_branch
    %980 = sbr.rel (0) target = $region25
  $region24: #{rnn_encoder_forward.1} parent=0 // pred_region
    _
  $region25: #{rnn_encoder_forward.1} parent=0 // pred_fallthru
    _
  // Predicated region
  $region26: #{rnn_encoder_forward.1} parent=0 // pred_check
    _
  $region27: #{rnn_encoder_forward.1} parent=0 // pred_check_branch
    %982 = sbr.rel (0) target = $region29
  $region28: #{rnn_encoder_forward.1} parent=0 // pred_region
    _
  $region29: #{rnn_encoder_forward.1} parent=0 // pred_fallthru
    _

</llo_original>
